<compile_context>
chip_gen: v5e
topology: v5e:2x2
jax: 0.10.0
libtpu: 0.0.40
codegen_flags: <defaults>
</compile_context>

<pallas_src>
import jax
import jax.numpy as jnp
from jax.experimental import pallas as pl
from jax.experimental.pallas import tpu as pltpu


# ------------------------------- helpers ----------------------------------- #

def _ceil_div(a, b):
    return -(-a // b)


def _round_up(a, b):
    return _ceil_div(a, b) * b


def _row_tile(m, tmax, align=16):
    """16-aligned row tile, capped at tmax, split into >=2 tiles when m allows
    so the ("parallel",) grid axis can be sharded across both v7x TensorCores."""
    if m <= align:
        return _round_up(max(m, 1), align)
    return min(tmax, _round_up(_ceil_div(m, 2), align))


def _pad_rows(a, target):
    pad = target - a.shape[0]
    if pad == 0:
        return a
    widths = [(0, 0)] * a.ndim
    widths[0] = (0, pad)
    return jnp.pad(a, widths)


# ----------------------------- Pallas kernels ------------------------------ #

def _conv_pool_kernel(x0_ref, x1_ref, x2_ref, x3_ref, w_ref, b_ref, o_ref):
    """Fused conv-as-matmul + 2x2 max-pool + bias + ReLU epilogue.

    x{q}_ref: (TM, KK) bf16 -- im2col rows of pool-window quadrant q, identical
              (n, hp, wp) row order for all 4 quadrants.
    w_ref   : (KK, Cout) bf16,  b_ref: (1, Cout) f32,  o_ref: (TM, Cout) bf16.
    """
    tm = x0_ref.shape[0]
    # Single long MXU matmul over all 4 quadrants (RHS stays resident).
    x = jnp.concatenate(
        [x0_ref[...], x1_ref[...], x2_ref[...], x3_ref[...]], axis=0)
    y = jnp.dot(x, w_ref[...], preferred_element_type=jnp.float32)
    pooled = jnp.max(y.reshape(4, tm, y.shape[-1]), axis=0)
    # relu(max_q(y_q) + b) == max_q(relu(y_q + b)): bias shared, ReLU monotone.
    o_ref[...] = jnp.maximum(pooled + b_ref[...], 0.0).astype(o_ref.dtype)


def _fc_stack_kernel(x_ref, w1_ref, b1_ref, w2_ref, b2_ref, w3_ref, b3_ref,
                     o_ref):
    """fc3(fc2(fc1(x))) in one kernel; intermediates stay on-chip (no ReLU,
    exactly like the PyTorch forward). bf16 operands, f32 accumulation."""
    h = jnp.dot(x_ref[...], w1_ref[...],
                preferred_element_type=jnp.float32) + b1_ref[...]
    h = jnp.dot(h.astype(w2_ref.dtype), w2_ref[...],
                preferred_element_type=jnp.float32) + b2_ref[...]
    h = jnp.dot(h.astype(w3_ref.dtype), w3_ref[...],
                preferred_element_type=jnp.float32) + b3_ref[...]
    o_ref[...] = h.astype(o_ref.dtype)


# ------------------------------ wrappers ----------------------------------- #

def conv_relu_pool(x_nhwc, w_hwio, b, *, tm_max=512):
    """VALID conv (stride 1) + bias + ReLU + 2x2/2 max pool. NHWC in/out,
    bf16 activations, f32 accumulation."""
    n, h, w, cin = x_nhwc.shape
    k = w_hwio.shape[0]
    cout = w_hwio.shape[3]
    ho, wo = h - k + 1, w - k + 1
    hp, wp = ho // 2, wo // 2
    kk = k * k * cin
    mq = n * hp * wp

    x_bf = x_nhwc.astype(jnp.bfloat16)

    tm = _row_tile(mq, tm_max)
    mq_pad = _round_up(mq, tm)
    grid = (mq_pad // tm,)

    # One im2col quadrant per 2x2 pool-window position, built directly from x
    # (no full-resolution `patches` intermediate, no quad restack copy).
    # Column order (kh, kw, ci) matches w_hwio.reshape(kk, cout).
    quads = []
    for dh in (0, 1):
        for dw in (0, 1):
            cols = [x_bf[:, kh + dh:kh + dh + 2 * hp:2,
                         kw + dw:kw + dw + 2 * wp:2, :]
                    for kh in range(k) for kw in range(k)]
            q = jnp.concatenate(cols, axis=-1).reshape(mq, kk)
            quads.append(_pad_rows(q, mq_pad))

    w2d = w_hwio.reshape(kk, cout).astype(jnp.bfloat16)
    b2d = b.reshape(1, cout).astype(jnp.float32)

    flops = 2 * 4 * mq_pad * kk * cout
    bytes_accessed = (2 * (4 * mq_pad * kk + kk * cout + mq_pad * cout)
                      + 4 * cout)

    quad_spec = pl.BlockSpec((tm, kk), lambda i: (i, 0))
    full_spec = lambda shape: pl.BlockSpec(shape, lambda i: (0, 0))

    out = pl.pallas_call(
        _conv_pool_kernel,
        out_shape=jax.ShapeDtypeStruct((mq_pad, cout), jnp.bfloat16),
        grid=grid,
        in_specs=[quad_spec, quad_spec, quad_spec, quad_spec,
                  full_spec((kk, cout)), full_spec((1, cout))],
        out_specs=pl.BlockSpec((tm, cout), lambda i: (i, 0)),
        compiler_params=pltpu.CompilerParams(
            dimension_semantics=("parallel",)),
        cost_estimate=pl.CostEstimate(flops=flops, transcendentals=0,
                                      bytes_accessed=bytes_accessed),
    )(*quads, w2d, b2d)

    out = out[:mq] if mq_pad != mq else out
    return out.reshape(n, hp, wp, cout)


def fc_stack(x, w1, b1, w2, b2, w3, b3, *, tm_max=512):
    """Fused fc1 -> fc2 -> fc3 (no ReLU), tiled over batch rows."""
    n, k1 = x.shape
    d1, d2, d3 = w1.shape[1], w2.shape[1], w3.shape[1]

    tm = _row_tile(n, tm_max)
    n_pad = _round_up(n, tm)
    x = _pad_rows(x.astype(jnp.bfloat16), n_pad)
    grid = (n_pad // tm,)

    flops = 2 * n_pad * (k1 * d1 + d1 * d2 + d2 * d3)
    bytes_accessed = (2 * (n_pad * k1 + k1 * d1 + d1 * d2 + d2 * d3)
                      + 4 * (d1 + d2 + d3) + 4 * n_pad * d3)

    full = lambda i: (0, 0)
    out = pl.pallas_call(
        _fc_stack_kernel,
        out_shape=jax.ShapeDtypeStruct((n_pad, d3), jnp.float32),
        grid=grid,
        in_specs=[
            pl.BlockSpec((tm, k1), lambda i: (i, 0)),
            pl.BlockSpec((k1, d1), full),
            pl.BlockSpec((1, d1), full),
            pl.BlockSpec((d1, d2), full),
            pl.BlockSpec((1, d2), full),
            pl.BlockSpec((d2, d3), full),
            pl.BlockSpec((1, d3), full),
        ],
        out_specs=pl.BlockSpec((tm, d3), lambda i: (i, 0)),
        compiler_params=pltpu.CompilerParams(
            dimension_semantics=("parallel",)),
        cost_estimate=pl.CostEstimate(flops=flops, transcendentals=0,
                                      bytes_accessed=bytes_accessed),
    )(x,
      w1.astype(jnp.bfloat16), b1.reshape(1, d1).astype(jnp.float32),
      w2.astype(jnp.bfloat16), b2.reshape(1, d2).astype(jnp.float32),
      w3.astype(jnp.bfloat16), b3.reshape(1, d3).astype(jnp.float32))
    return out[:n] if n_pad != n else out


# ------------------------------ model glue ---------------------------------- #

def init_params(key):
    ks = jax.random.split(key, 10)
    s = 0.05
    f32 = jnp.float32
    return {
        "w_conv1": jax.random.normal(ks[0], (5, 5, 3, 16), f32) * s,
        "b_conv1": jax.random.normal(ks[1], (16,), f32) * s,
        "w_conv2": jax.random.normal(ks[2], (5, 5, 16, 32), f32) * s,
        "b_conv2": jax.random.normal(ks[3], (32,), f32) * s,
        # Torch layout: fc1 rows indexed in (C, H, W) flatten order.
        "w_fc1": jax.random.normal(ks[4], (32 * 5 * 5, 120), f32) * s,
        "b_fc1": jax.random.normal(ks[5], (120,), f32) * s,
        "w_fc2": jax.random.normal(ks[6], (120, 84), f32) * s,
        "b_fc2": jax.random.normal(ks[7], (84,), f32) * s,
        "w_fc3": jax.random.normal(ks[8], (84, 10), f32) * s,
        "b_fc3": jax.random.normal(ks[9], (10,), f32) * s,
    }


def prepare_for_kernel(p):
    """One-time host-side prep: reorder w_fc1 rows from torch's (C,H,W) flatten
    order to the kernel's NHWC flatten order (kills the activation transpose),
    and cast all weights to bf16 (biases stay f32)."""
    bf = jnp.bfloat16
    w_fc1 = (p["w_fc1"].reshape(32, 5, 5, 120)
             .transpose(1, 2, 0, 3).reshape(32 * 5 * 5, 120))
    return {
        "w_conv1": p["w_conv1"].astype(bf), "b_conv1": p["b_conv1"],
        "w_conv2": p["w_conv2"].astype(bf), "b_conv2": p["b_conv2"],
        "w_fc1": w_fc1.astype(bf), "b_fc1": p["b_fc1"],
        "w_fc2": p["w_fc2"].astype(bf), "b_fc2": p["b_fc2"],
        "w_fc3": p["w_fc3"].astype(bf), "b_fc3": p["b_fc3"],
    }


@jax.jit
def lenet_forward(x_nchw, kp):
    n = x_nchw.shape[0]
    x = jnp.transpose(x_nchw, (0, 2, 3, 1)).astype(jnp.bfloat16)  # NCHW -> NHWC
    x = conv_relu_pool(x, kp["w_conv1"], kp["b_conv1"])      # (N, 14, 14, 16)
    x = conv_relu_pool(x, kp["w_conv2"], kp["b_conv2"])      # (N,  5,  5, 32)
    # TODO(synk): conv2's pooled output could be fused straight into the FC
    # kernel to avoid this small (N, 800) HBM round-trip and the 32-lane store.
    x = x.reshape(n, 5 * 5 * 32)                             # HWC flatten
    return fc_stack(x, kp["w_fc1"], kp["b_fc1"], kp["w_fc2"], kp["b_fc2"],
                    kp["w_fc3"], kp["b_fc3"])


def lenet_reference(x_nchw, p):
    """Pure-JAX f32 reference mirroring the PyTorch forward (torch param layout)."""
    def conv(x, w_hwio, b):
        y = jax.lax.conv_general_dilated(
            x, w_hwio, window_strides=(1, 1), padding="VALID",
            dimension_numbers=("NCHW", "HWIO", "NCHW"))
        return jax.nn.relu(y + b[None, :, None, None])

    def pool(x):
        return jax.lax.reduce_window(x, -jnp.inf, jax.lax.max,
                                     (1, 1, 2, 2), (1, 1, 2, 2), "VALID")

    x = pool(conv(x_nchw, p["w_conv1"], p["b_conv1"]))
    x = pool(conv(x, p["w_conv2"], p["b_conv2"]))
    x = x.reshape(x.shape[0], -1)            # torch view: (C, H, W) order
    x = x @ p["w_fc1"] + p["b_fc1"]
    x = x @ p["w_fc2"] + p["b_fc2"]          # no ReLU on fc layers (per spec)
    x = x @ p["w_fc3"] + p["b_fc3"]
    return x


if __name__ == "__main__":
    key = jax.random.PRNGKey(0)
    pkey, xkey = jax.random.split(key)
    params = init_params(pkey)
    kparams = prepare_for_kernel(params)

    # LeNet geometry requires 3x32x32 inputs so the flatten is 32*5*5 = 800.
    x = jax.random.normal(xkey, (2, 3, 32, 32), jnp.float32)

    out = jax.block_until_ready(lenet_forward(x, kparams))
    assert out.shape == (2, 10), out.shape

    ref = lenet_reference(x, params)
    max_err = float(jnp.max(jnp.abs(out - ref)))
    # bf16 streamed operands (f32 accumulation) -> loosened tolerance vs f32 ref.
    assert jnp.allclose(out, ref, atol=3e-2, rtol=3e-2), max_err

    print("KERNEL_OK")
</pallas_src>

<mosaic_0001>
module attributes {stable_mosaic.version = 11 : i64} {
  func.func @_conv_pool_kernel(%arg0: i32, %arg1: memref<208x75xbf16, #tpu.memory_space<vmem>>, %arg2: memref<208x75xbf16, #tpu.memory_space<vmem>>, %arg3: memref<208x75xbf16, #tpu.memory_space<vmem>>, %arg4: memref<208x75xbf16, #tpu.memory_space<vmem>>, %arg5: memref<75x16xbf16, #tpu.memory_space<vmem>>, %arg6: memref<1x16xf32, #tpu.memory_space<vmem>>, %arg7: memref<208x16xbf16, #tpu.memory_space<vmem>>) attributes {dimension_semantics = [#tpu.dimension_semantics<parallel>], iteration_bounds = array<i64: 2>, scalar_prefetch = 0 : i64, scratch_operands = 0 : i64, tpu.core_type = #tpu.core_type<tc>, window_params = [{transform_indices = @transform_0, window_bounds = array<i64: 208, 75>}, {transform_indices = @transform_1, window_bounds = array<i64: 208, 75>}, {transform_indices = @transform_2, window_bounds = array<i64: 208, 75>}, {transform_indices = @transform_3, window_bounds = array<i64: 208, 75>}, {pipeline_mode = #tpu.pipeline_mode<synchronous>, transform_indices = @transform_4, window_bounds = array<i64: 75, 16>}, {pipeline_mode = #tpu.pipeline_mode<synchronous>, transform_indices = @transform_5, window_bounds = array<i64: 1, 16>}, {transform_indices = @transform_6, window_bounds = array<i64: 208, 16>}]} {
    %c0 = arith.constant 0 : index
    %c0_0 = arith.constant 0 : index
    %0 = vector.load %arg1[%c0, %c0_0] : memref<208x75xbf16, #tpu.memory_space<vmem>>, vector<208x75xbf16>
    %c0_1 = arith.constant 0 : index
    %c0_2 = arith.constant 0 : index
    %1 = vector.load %arg2[%c0_1, %c0_2] : memref<208x75xbf16, #tpu.memory_space<vmem>>, vector<208x75xbf16>
    %c0_3 = arith.constant 0 : index
    %c0_4 = arith.constant 0 : index
    %2 = vector.load %arg3[%c0_3, %c0_4] : memref<208x75xbf16, #tpu.memory_space<vmem>>, vector<208x75xbf16>
    %c0_5 = arith.constant 0 : index
    %c0_6 = arith.constant 0 : index
    %3 = vector.load %arg4[%c0_5, %c0_6] : memref<208x75xbf16, #tpu.memory_space<vmem>>, vector<208x75xbf16>
    %4 = tpu.concatenate %0, %1, %2, %3 in 0 : vector<208x75xbf16>, vector<208x75xbf16>, vector<208x75xbf16>, vector<208x75xbf16> -> vector<832x75xbf16>
    %c0_7 = arith.constant 0 : index
    %c0_8 = arith.constant 0 : index
    %5 = vector.load %arg5[%c0_7, %c0_8] : memref<75x16xbf16, #tpu.memory_space<vmem>>, vector<75x16xbf16>
    %cst = arith.constant dense<0.000000e+00> : vector<832x16xf32>
    %6 = tpu.matmul %4, %5, %cst {dimension_numbers = #tpu.dot_dimension_numbers<[1], [0], [0], [1], [0, 0, 1, 1], [], []>} : vector<832x75xbf16>, vector<75x16xbf16>, vector<832x16xf32> -> vector<832x16xf32>
    %7 = vector.shape_cast %6 : vector<832x16xf32> to vector<4x208x16xf32>
    %cst_9 = arith.constant dense<0xFF800000> : vector<208x16xf32>
    %8 = vector.multi_reduction <maximumf>, %7, %cst_9 [0] : vector<4x208x16xf32> to vector<208x16xf32>
    %c0_10 = arith.constant 0 : index
    %c0_11 = arith.constant 0 : index
    %9 = vector.load %arg6[%c0_10, %c0_11] : memref<1x16xf32, #tpu.memory_space<vmem>>, vector<1x16xf32>
    %10 = vector.broadcast %9 : vector<1x16xf32> to vector<208x16xf32>
    %11 = arith.addf %8, %10 : vector<208x16xf32>
    %cst_12 = arith.constant 0.000000e+00 : f32
    %12 = vector.broadcast %cst_12 : f32 to vector<208x16xf32>
    %13 = arith.maximumf %11, %12 : vector<208x16xf32>
    %14 = arith.truncf %13 : vector<208x16xf32> to vector<208x16xbf16>
    %c0_13 = arith.constant 0 : index
    %c0_14 = arith.constant 0 : index
    %15 = vector.load %arg7[%c0_13, %c0_14] : memref<208x16xbf16, #tpu.memory_space<vmem>>, vector<208x16xbf16>
    tpu.vector_store %arg7[%c0_13, %c0_14], %14 {strides = array<i32>} : memref<208x16xbf16, #tpu.memory_space<vmem>>, vector<208x16xbf16>,
    return
  }
  func.func @transform_0(%arg0: i32) -> (i32, i32) {
    %c0_i32 = arith.constant 0 : i32
    %c0_i32_0 = arith.constant 0 : i32
    return %arg0, %c0_i32 : i32, i32
  }
  func.func @transform_1(%arg0: i32) -> (i32, i32) {
    %c0_i32 = arith.constant 0 : i32
    %c0_i32_0 = arith.constant 0 : i32
    return %arg0, %c0_i32 : i32, i32
  }
  func.func @transform_2(%arg0: i32) -> (i32, i32) {
    %c0_i32 = arith.constant 0 : i32
    %c0_i32_0 = arith.constant 0 : i32
    return %arg0, %c0_i32 : i32, i32
  }
  func.func @transform_3(%arg0: i32) -> (i32, i32) {
    %c0_i32 = arith.constant 0 : i32
    %c0_i32_0 = arith.constant 0 : i32
    return %arg0, %c0_i32 : i32, i32
  }
  func.func @transform_4(%arg0: i32) -> (i32, i32) {
    %c0_i32 = arith.constant 0 : i32
    %c0_i32_0 = arith.constant 0 : i32
    %c0_i32_1 = arith.constant 0 : i32
    return %c0_i32, %c0_i32_0 : i32, i32
  }
  func.func @transform_5(%arg0: i32) -> (i32, i32) {
    %c0_i32 = arith.constant 0 : i32
    %c0_i32_0 = arith.constant 0 : i32
    %c0_i32_1 = arith.constant 0 : i32
    return %c0_i32, %c0_i32_0 : i32, i32
  }
  func.func @transform_6(%arg0: i32) -> (i32, i32) {
    %c0_i32 = arith.constant 0 : i32
    %c0_i32_0 = arith.constant 0 : i32
    return %arg0, %c0_i32 : i32, i32
  }
}

module attributes {stable_mosaic.version = 11 : i64} {
  func.func @_conv_pool_kernel(%arg0: i32, %arg1: memref<32x400xbf16, #tpu.memory_space<vmem>>, %arg2: memref<32x400xbf16, #tpu.memory_space<vmem>>, %arg3: memref<32x400xbf16, #tpu.memory_space<vmem>>, %arg4: memref<32x400xbf16, #tpu.memory_space<vmem>>, %arg5: memref<400x32xbf16, #tpu.memory_space<vmem>>, %arg6: memref<1x32xf32, #tpu.memory_space<vmem>>, %arg7: memref<32x32xbf16, #tpu.memory_space<vmem>>) attributes {dimension_semantics = [#tpu.dimension_semantics<parallel>], iteration_bounds = array<i64: 2>, scalar_prefetch = 0 : i64, scratch_operands = 0 : i64, tpu.core_type = #tpu.core_type<tc>, window_params = [{transform_indices = @transform_0, window_bounds = array<i64: 32, 400>}, {transform_indices = @transform_1, window_bounds = array<i64: 32, 400>}, {transform_indices = @transform_2, window_bounds = array<i64: 32, 400>}, {transform_indices = @transform_3, window_bounds = array<i64: 32, 400>}, {pipeline_mode = #tpu.pipeline_mode<synchronous>, transform_indices = @transform_4, window_bounds = array<i64: 400, 32>}, {pipeline_mode = #tpu.pipeline_mode<synchronous>, transform_indices = @transform_5, window_bounds = array<i64: 1, 32>}, {transform_indices = @transform_6, window_bounds = array<i64: 32, 32>}]} {
    %c0 = arith.constant 0 : index
    %c0_0 = arith.constant 0 : index
    %0 = vector.load %arg1[%c0, %c0_0] : memref<32x400xbf16, #tpu.memory_space<vmem>>, vector<32x400xbf16>
    %c0_1 = arith.constant 0 : index
    %c0_2 = arith.constant 0 : index
    %1 = vector.load %arg2[%c0_1, %c0_2] : memref<32x400xbf16, #tpu.memory_space<vmem>>, vector<32x400xbf16>
    %c0_3 = arith.constant 0 : index
    %c0_4 = arith.constant 0 : index
    %2 = vector.load %arg3[%c0_3, %c0_4] : memref<32x400xbf16, #tpu.memory_space<vmem>>, vector<32x400xbf16>
    %c0_5 = arith.constant 0 : index
    %c0_6 = arith.constant 0 : index
    %3 = vector.load %arg4[%c0_5, %c0_6] : memref<32x400xbf16, #tpu.memory_space<vmem>>, vector<32x400xbf16>
    %4 = tpu.concatenate %0, %1, %2, %3 in 0 : vector<32x400xbf16>, vector<32x400xbf16>, vector<32x400xbf16>, vector<32x400xbf16> -> vector<128x400xbf16>
    %c0_7 = arith.constant 0 : index
    %c0_8 = arith.constant 0 : index
    %5 = vector.load %arg5[%c0_7, %c0_8] : memref<400x32xbf16, #tpu.memory_space<vmem>>, vector<400x32xbf16>
    %cst = arith.constant dense<0.000000e+00> : vector<128x32xf32>
    %6 = tpu.matmul %4, %5, %cst {dimension_numbers = #tpu.dot_dimension_numbers<[1], [0], [0], [1], [0, 0, 1, 1], [], []>} : vector<128x400xbf16>, vector<400x32xbf16>, vector<128x32xf32> -> vector<128x32xf32>
    %7 = vector.shape_cast %6 : vector<128x32xf32> to vector<4x32x32xf32>
    %cst_9 = arith.constant dense<0xFF800000> : vector<32x32xf32>
    %8 = vector.multi_reduction <maximumf>, %7, %cst_9 [0] : vector<4x32x32xf32> to vector<32x32xf32>
    %c0_10 = arith.constant 0 : index
    %c0_11 = arith.constant 0 : index
    %9 = vector.load %arg6[%c0_10, %c0_11] : memref<1x32xf32, #tpu.memory_space<vmem>>, vector<1x32xf32>
    %10 = vector.broadcast %9 : vector<1x32xf32> to vector<32x32xf32>
    %11 = arith.addf %8, %10 : vector<32x32xf32>
    %cst_12 = arith.constant 0.000000e+00 : f32
    %12 = vector.broadcast %cst_12 : f32 to vector<32x32xf32>
    %13 = arith.maximumf %11, %12 : vector<32x32xf32>
    %14 = arith.truncf %13 : vector<32x32xf32> to vector<32x32xbf16>
    %c0_13 = arith.constant 0 : index
    %c0_14 = arith.constant 0 : index
    %15 = vector.load %arg7[%c0_13, %c0_14] : memref<32x32xbf16, #tpu.memory_space<vmem>>, vector<32x32xbf16>
    tpu.vector_store %arg7[%c0_13, %c0_14], %14 {strides = array<i32>} : memref<32x32xbf16, #tpu.memory_space<vmem>>, vector<32x32xbf16>,
    return
  }
  func.func @transform_0(%arg0: i32) -> (i32, i32) {
    %c0_i32 = arith.constant 0 : i32
    %c0_i32_0 = arith.constant 0 : i32
    return %arg0, %c0_i32 : i32, i32
  }
  func.func @transform_1(%arg0: i32) -> (i32, i32) {
    %c0_i32 = arith.constant 0 : i32
    %c0_i32_0 = arith.constant 0 : i32
    return %arg0, %c0_i32 : i32, i32
  }
  func.func @transform_2(%arg0: i32) -> (i32, i32) {
    %c0_i32 = arith.constant 0 : i32
    %c0_i32_0 = arith.constant 0 : i32
    return %arg0, %c0_i32 : i32, i32
  }
  func.func @transform_3(%arg0: i32) -> (i32, i32) {
    %c0_i32 = arith.constant 0 : i32
    %c0_i32_0 = arith.constant 0 : i32
    return %arg0, %c0_i32 : i32, i32
  }
  func.func @transform_4(%arg0: i32) -> (i32, i32) {
    %c0_i32 = arith.constant 0 : i32
    %c0_i32_0 = arith.constant 0 : i32
    %c0_i32_1 = arith.constant 0 : i32
    return %c0_i32, %c0_i32_0 : i32, i32
  }
  func.func @transform_5(%arg0: i32) -> (i32, i32) {
    %c0_i32 = arith.constant 0 : i32
    %c0_i32_0 = arith.constant 0 : i32
    %c0_i32_1 = arith.constant 0 : i32
    return %c0_i32, %c0_i32_0 : i32, i32
  }
  func.func @transform_6(%arg0: i32) -> (i32, i32) {
    %c0_i32 = arith.constant 0 : i32
    %c0_i32_0 = arith.constant 0 : i32
    return %arg0, %c0_i32 : i32, i32
  }
}

module attributes {stable_mosaic.version = 11 : i64} {
  func.func @_fc_stack_kernel(%arg0: i32, %arg1: memref<16x800xbf16, #tpu.memory_space<vmem>>, %arg2: memref<800x120xbf16, #tpu.memory_space<vmem>>, %arg3: memref<1x120xf32, #tpu.memory_space<vmem>>, %arg4: memref<120x84xbf16, #tpu.memory_space<vmem>>, %arg5: memref<1x84xf32, #tpu.memory_space<vmem>>, %arg6: memref<84x10xbf16, #tpu.memory_space<vmem>>, %arg7: memref<1x10xf32, #tpu.memory_space<vmem>>, %arg8: memref<16x10xf32, #tpu.memory_space<vmem>>) attributes {dimension_semantics = [#tpu.dimension_semantics<parallel>], iteration_bounds = array<i64: 1>, scalar_prefetch = 0 : i64, scratch_operands = 0 : i64, tpu.core_type = #tpu.core_type<tc>, window_params = [{transform_indices = @transform_0, window_bounds = array<i64: 16, 800>}, {pipeline_mode = #tpu.pipeline_mode<synchronous>, transform_indices = @transform_1, window_bounds = array<i64: 800, 120>}, {pipeline_mode = #tpu.pipeline_mode<synchronous>, transform_indices = @transform_2, window_bounds = array<i64: 1, 120>}, {pipeline_mode = #tpu.pipeline_mode<synchronous>, transform_indices = @transform_3, window_bounds = array<i64: 120, 84>}, {pipeline_mode = #tpu.pipeline_mode<synchronous>, transform_indices = @transform_4, window_bounds = array<i64: 1, 84>}, {pipeline_mode = #tpu.pipeline_mode<synchronous>, transform_indices = @transform_5, window_bounds = array<i64: 84, 10>}, {pipeline_mode = #tpu.pipeline_mode<synchronous>, transform_indices = @transform_6, window_bounds = array<i64: 1, 10>}, {transform_indices = @transform_7, window_bounds = array<i64: 16, 10>}]} {
    %c0 = arith.constant 0 : index
    %c0_0 = arith.constant 0 : index
    %0 = vector.load %arg1[%c0, %c0_0] : memref<16x800xbf16, #tpu.memory_space<vmem>>, vector<16x800xbf16>
    %c0_1 = arith.constant 0 : index
    %c0_2 = arith.constant 0 : index
    %1 = vector.load %arg2[%c0_1, %c0_2] : memref<800x120xbf16, #tpu.memory_space<vmem>>, vector<800x120xbf16>
    %cst = arith.constant dense<0.000000e+00> : vector<16x120xf32>
    %2 = tpu.matmul %0, %1, %cst {dimension_numbers = #tpu.dot_dimension_numbers<[1], [0], [0], [1], [0, 0, 1, 1], [], []>} : vector<16x800xbf16>, vector<800x120xbf16>, vector<16x120xf32> -> vector<16x120xf32>
    %c0_3 = arith.constant 0 : index
    %c0_4 = arith.constant 0 : index
    %3 = vector.load %arg3[%c0_3, %c0_4] : memref<1x120xf32, #tpu.memory_space<vmem>>, vector<1x120xf32>
    %4 = vector.broadcast %3 : vector<1x120xf32> to vector<16x120xf32>
    %5 = arith.addf %2, %4 : vector<16x120xf32>
    %6 = arith.truncf %5 : vector<16x120xf32> to vector<16x120xbf16>
    %c0_5 = arith.constant 0 : index
    %c0_6 = arith.constant 0 : index
    %7 = vector.load %arg4[%c0_5, %c0_6] : memref<120x84xbf16, #tpu.memory_space<vmem>>, vector<120x84xbf16>
    %cst_7 = arith.constant dense<0.000000e+00> : vector<16x84xf32>
    %8 = tpu.matmul %6, %7, %cst_7 {dimension_numbers = #tpu.dot_dimension_numbers<[1], [0], [0], [1], [0, 0, 1, 1], [], []>} : vector<16x120xbf16>, vector<120x84xbf16>, vector<16x84xf32> -> vector<16x84xf32>
    %c0_8 = arith.constant 0 : index
    %c0_9 = arith.constant 0 : index
    %9 = vector.load %arg5[%c0_8, %c0_9] : memref<1x84xf32, #tpu.memory_space<vmem>>, vector<1x84xf32>
    %10 = vector.broadcast %9 : vector<1x84xf32> to vector<16x84xf32>
    %11 = arith.addf %8, %10 : vector<16x84xf32>
    %12 = arith.truncf %11 : vector<16x84xf32> to vector<16x84xbf16>
    %c0_10 = arith.constant 0 : index
    %c0_11 = arith.constant 0 : index
    %13 = vector.load %arg6[%c0_10, %c0_11] : memref<84x10xbf16, #tpu.memory_space<vmem>>, vector<84x10xbf16>
    %cst_12 = arith.constant dense<0.000000e+00> : vector<16x10xf32>
    %14 = tpu.matmul %12, %13, %cst_12 {dimension_numbers = #tpu.dot_dimension_numbers<[1], [0], [0], [1], [0, 0, 1, 1], [], []>} : vector<16x84xbf16>, vector<84x10xbf16>, vector<16x10xf32> -> vector<16x10xf32>
    %c0_13 = arith.constant 0 : index
    %c0_14 = arith.constant 0 : index
    %15 = vector.load %arg7[%c0_13, %c0_14] : memref<1x10xf32, #tpu.memory_space<vmem>>, vector<1x10xf32>
    %16 = vector.broadcast %15 : vector<1x10xf32> to vector<16x10xf32>
    %17 = arith.addf %14, %16 : vector<16x10xf32>
    %c0_15 = arith.constant 0 : index
    %c0_16 = arith.constant 0 : index
    %18 = vector.load %arg8[%c0_15, %c0_16] : memref<16x10xf32, #tpu.memory_space<vmem>>, vector<16x10xf32>
    tpu.vector_store %arg8[%c0_15, %c0_16], %17 {strides = array<i32>} : memref<16x10xf32, #tpu.memory_space<vmem>>, vector<16x10xf32>,
    return
  }
  func.func @transform_0(%arg0: i32) -> (i32, i32) {
    %c0_i32 = arith.constant 0 : i32
    %c0_i32_0 = arith.constant 0 : i32
    return %arg0, %c0_i32 : i32, i32
  }
  func.func @transform_1(%arg0: i32) -> (i32, i32) {
    %c0_i32 = arith.constant 0 : i32
    %c0_i32_0 = arith.constant 0 : i32
    %c0_i32_1 = arith.constant 0 : i32
    return %c0_i32, %c0_i32_0 : i32, i32
  }
  func.func @transform_2(%arg0: i32) -> (i32, i32) {
    %c0_i32 = arith.constant 0 : i32
    %c0_i32_0 = arith.constant 0 : i32
    %c0_i32_1 = arith.constant 0 : i32
    return %c0_i32, %c0_i32_0 : i32, i32
  }
  func.func @transform_3(%arg0: i32) -> (i32, i32) {
    %c0_i32 = arith.constant 0 : i32
    %c0_i32_0 = arith.constant 0 : i32
    %c0_i32_1 = arith.constant 0 : i32
    return %c0_i32, %c0_i32_0 : i32, i32
  }
  func.func @transform_4(%arg0: i32) -> (i32, i32) {
    %c0_i32 = arith.constant 0 : i32
    %c0_i32_0 = arith.constant 0 : i32
    %c0_i32_1 = arith.constant 0 : i32
    return %c0_i32, %c0_i32_0 : i32, i32
  }
  func.func @transform_5(%arg0: i32) -> (i32, i32) {
    %c0_i32 = arith.constant 0 : i32
    %c0_i32_0 = arith.constant 0 : i32
    %c0_i32_1 = arith.constant 0 : i32
    return %c0_i32, %c0_i32_0 : i32, i32
  }
  func.func @transform_6(%arg0: i32) -> (i32, i32) {
    %c0_i32 = arith.constant 0 : i32
    %c0_i32_0 = arith.constant 0 : i32
    %c0_i32_1 = arith.constant 0 : i32
    return %c0_i32, %c0_i32_0 : i32, i32
  }
  func.func @transform_7(%arg0: i32) -> (i32, i32) {
    %c0_i32 = arith.constant 0 : i32
    %c0_i32_0 = arith.constant 0 : i32
    return %arg0, %c0_i32 : i32, i32
  }
}

</mosaic_0001>

<llo_original>
// kernel: lenet_forward.3
$region0: #{lenet_forward.3}
  #allocation0 [shape = 'u32[]', space=smem, size = 0x4, offset = 0x4, fixed_abs, tag = 'smem constant byte address 0x4 - core index']
  #allocation1 [shape = 'u32[72,128]{1,0:T(1,128)}', space=vmem, size = 0x9000, scoped, tag = 'internal scratch']
  %s0 = inlined_call_operand.vmem [shape: bf16[416,75], index: 0, kind: input, shape index: {}]
  %s1 = inlined_call_operand.vmem [shape: bf16[416,75], index: 1, kind: input, shape index: {}]
  %s2 = inlined_call_operand.vmem [shape: bf16[416,75], index: 2, kind: input, shape index: {}]
  %s3 = inlined_call_operand.vmem [shape: bf16[416,75], index: 3, kind: input, shape index: {}]
  %s4 = inlined_call_operand.vmem [shape: bf16[75,16], index: 4, kind: input, shape index: {}]
  %s5 = inlined_call_operand.vmem [shape: f32[1,16], index: 5, kind: input, shape index: {}]
  %s6 = inlined_call_operand.vmem [shape: bf16[416,16], index: 6, kind: output, shape index: {}]
  %s7 = sld [smem:[#allocation0]]
  $region57: #{lenet_forward.3} parent=0
    _
  %s9 = ssub.s32 1, %s7
  %s10 = scalar_select 0, %s9, %s7
  loop: start=0, step=1, limit=4
  $region2: #{lenet_forward.3} parent=0 // loop_pre_header
    _
  $region3: #{lenet_forward.3} parent=0 // loop_header
    %s12 = sphi 0, %s16
    %p13 = scmp.ge.s32.totalorder %s12, 4
    %s22 = sphi 0, %s24
    %s25 = sphi 0, %s22
    %s26 = sphi 0, %s25
    %s42 = sphi 0, %s26
    %s48 = sphi 0, %s50
    %s51 = sphi 0, %s48
    %s52 = sphi 0, %s51
    %s68 = sphi 0, %s52
    %s74 = sphi 0, %s76
    %s77 = sphi 0, %s74
    %s78 = sphi 0, %s77
    %s94 = sphi 0, %s78
    %s100 = sphi 0, %s102
    %s103 = sphi 0, %s100
    %s104 = sphi 0, %s103
    %s120 = sphi 0, %s104
    %s124 = sphi 0, %s124
    %s126 = sphi 0, %s124
    %s127 = sphi 0, %s126
    %s141 = sphi 0, %s127
    %s145 = sphi 0, %s145
    %s147 = sphi 0, %s145
    %s148 = sphi 0, %s147
    %s162 = sphi 0, %s148
    %s168 = sphi 0, %s170
    %s171 = sphi 0, %s168
    %s172 = sphi 0, %s171
    %s188 = sphi 0, %s172
  $region4: #{lenet_forward.3} parent=0 // loop_header_branch
    %15 = sbr.rel (%p13) target = $region8
  $region5: #{lenet_forward.3} parent=0 // loop_body
    %s17 = ssub.s32 %s12, 1
    %s18 = ssub.s32 %s12, 2
    %s19 = sadd.s32 %s12, 1
    %s20 = ssub.s32 %s12, %s19
    %p21 = scmp.eq.s32.totalorder %s20, 0
    %s23 = sadd.s32 %s22, 1
    %s24 = scalar_select %p21, %s22, %s23
    %p27 = pneg %p21
    %p28 = scmp.eq.s32.totalorder %s12, 1
    %p29 = por %p27, %p28
    %p30 = scmp.ne.s32.totalorder %s22, %s25
    %p31 = scmp.eq.s32.totalorder %s12, 0
    %p32 = por %p30, %p31
    %p33 = scmp.ne.s32.totalorder %s22, %s25
    %p34 = scmp.eq.s32.totalorder %s17, 1
    %p35 = por %p33, %p34
    %p36 = scmp.ne.s32.totalorder %s25, %s26
    %p37 = scmp.eq.s32.totalorder %s17, 0
    %p38 = por %p36, %p37
    %p39 = scmp.ne.s32.totalorder %s25, %s26
    %p40 = scmp.eq.s32.totalorder %s18, 1
    %p41 = por %p39, %p40
    %p43 = scmp.ne.s32.totalorder %s26, %s42
    %p44 = scmp.eq.s32.totalorder %s18, 0
    %p45 = por %p43, %p44
    %s46 = ssub.s32 %s12, %s19
    %p47 = scmp.eq.s32.totalorder %s46, 0
    %s49 = sadd.s32 %s48, 1
    %s50 = scalar_select %p47, %s48, %s49
    %p53 = pneg %p47
    %p54 = scmp.eq.s32.totalorder %s12, 1
    %p55 = por %p53, %p54
    %p56 = scmp.ne.s32.totalorder %s48, %s51
    %p57 = scmp.eq.s32.totalorder %s12, 0
    %p58 = por %p56, %p57
    %p59 = scmp.ne.s32.totalorder %s48, %s51
    %p60 = scmp.eq.s32.totalorder %s17, 1
    %p61 = por %p59, %p60
    %p62 = scmp.ne.s32.totalorder %s51, %s52
    %p63 = scmp.eq.s32.totalorder %s17, 0
    %p64 = por %p62, %p63
    %p65 = scmp.ne.s32.totalorder %s51, %s52
    %p66 = scmp.eq.s32.totalorder %s18, 1
    %p67 = por %p65, %p66
    %p69 = scmp.ne.s32.totalorder %s52, %s68
    %p70 = scmp.eq.s32.totalorder %s18, 0
    %p71 = por %p69, %p70
    %s72 = ssub.s32 %s12, %s19
    %p73 = scmp.eq.s32.totalorder %s72, 0
    %s75 = sadd.s32 %s74, 1
    %s76 = scalar_select %p73, %s74, %s75
    %p79 = pneg %p73
    %p80 = scmp.eq.s32.totalorder %s12, 1
    %p81 = por %p79, %p80
    %p82 = scmp.ne.s32.totalorder %s74, %s77
    %p83 = scmp.eq.s32.totalorder %s12, 0
    %p84 = por %p82, %p83
    %p85 = scmp.ne.s32.totalorder %s74, %s77
    %p86 = scmp.eq.s32.totalorder %s17, 1
    %p87 = por %p85, %p86
    %p88 = scmp.ne.s32.totalorder %s77, %s78
    %p89 = scmp.eq.s32.totalorder %s17, 0
    %p90 = por %p88, %p89
    %p91 = scmp.ne.s32.totalorder %s77, %s78
    %p92 = scmp.eq.s32.totalorder %s18, 1
    %p93 = por %p91, %p92
    %p95 = scmp.ne.s32.totalorder %s78, %s94
    %p96 = scmp.eq.s32.totalorder %s18, 0
    %p97 = por %p95, %p96
    %s98 = ssub.s32 %s12, %s19
    %p99 = scmp.eq.s32.totalorder %s98, 0
    %s101 = sadd.s32 %s100, 1
    %s102 = scalar_select %p99, %s100, %s101
    %p105 = pneg %p99
    %p106 = scmp.eq.s32.totalorder %s12, 1
    %p107 = por %p105, %p106
    %p108 = scmp.ne.s32.totalorder %s100, %s103
    %p109 = scmp.eq.s32.totalorder %s12, 0
    %p110 = por %p108, %p109
    %p111 = scmp.ne.s32.totalorder %s100, %s103
    %p112 = scmp.eq.s32.totalorder %s17, 1
    %p113 = por %p111, %p112
    %p114 = scmp.ne.s32.totalorder %s103, %s104
    %p115 = scmp.eq.s32.totalorder %s17, 0
    %p116 = por %p114, %p115
    %p117 = scmp.ne.s32.totalorder %s103, %s104
    %p118 = scmp.eq.s32.totalorder %s18, 1
    %p119 = por %p117, %p118
    %p121 = scmp.ne.s32.totalorder %s104, %s120
    %p122 = scmp.eq.s32.totalorder %s18, 0
    %p123 = por %p121, %p122
    %s125 = sadd.s32 %s124, 1
    %p128 = scmp.eq.s32.totalorder %s12, 1
    %p129 = scmp.ne.s32.totalorder %s124, %s126
    %p130 = scmp.eq.s32.totalorder %s12, 0
    %p131 = por %p129, %p130
    %p132 = scmp.ne.s32.totalorder %s124, %s126
    %p133 = scmp.eq.s32.totalorder %s17, 1
    %p134 = por %p132, %p133
    %p135 = scmp.ne.s32.totalorder %s126, %s127
    %p136 = scmp.eq.s32.totalorder %s17, 0
    %p137 = por %p135, %p136
    %p138 = scmp.ne.s32.totalorder %s126, %s127
    %p139 = scmp.eq.s32.totalorder %s18, 1
    %p140 = por %p138, %p139
    %p142 = scmp.ne.s32.totalorder %s127, %s141
    %p143 = scmp.eq.s32.totalorder %s18, 0
    %p144 = por %p142, %p143
    %s146 = sadd.s32 %s145, 1
    %p149 = scmp.eq.s32.totalorder %s12, 1
    %p150 = scmp.ne.s32.totalorder %s145, %s147
    %p151 = scmp.eq.s32.totalorder %s12, 0
    %p152 = por %p150, %p151
    %p153 = scmp.ne.s32.totalorder %s145, %s147
    %p154 = scmp.eq.s32.totalorder %s17, 1
    %p155 = por %p153, %p154
    %p156 = scmp.ne.s32.totalorder %s147, %s148
    %p157 = scmp.eq.s32.totalorder %s17, 0
    %p158 = por %p156, %p157
    %p159 = scmp.ne.s32.totalorder %s147, %s148
    %p160 = scmp.eq.s32.totalorder %s18, 1
    %p161 = por %p159, %p160
    %p163 = scmp.ne.s32.totalorder %s148, %s162
    %p164 = scmp.eq.s32.totalorder %s18, 0
    %p165 = por %p163, %p164
    %s166 = ssub.s32 %s12, %s19
    %p167 = scmp.eq.s32.totalorder %s166, 0
    %s169 = sadd.s32 %s168, 1
    %s170 = scalar_select %p167, %s168, %s169
    %p173 = pneg %p167
    %p174 = scmp.eq.s32.totalorder %s12, 1
    %p175 = por %p173, %p174
    %p176 = scmp.ne.s32.totalorder %s168, %s171
    %p177 = scmp.eq.s32.totalorder %s12, 0
    %p178 = por %p176, %p177
    %p179 = scmp.ne.s32.totalorder %s168, %s171
    %p180 = scmp.eq.s32.totalorder %s17, 1
    %p181 = por %p179, %p180
    %p182 = scmp.ne.s32.totalorder %s171, %s172
    %p183 = scmp.eq.s32.totalorder %s17, 0
    %p184 = por %p182, %p183
    %p185 = scmp.ne.s32.totalorder %s171, %s172
    %p186 = scmp.eq.s32.totalorder %s18, 1
    %p187 = por %p185, %p186
    %p189 = scmp.ne.s32.totalorder %s172, %s188
    %p190 = scmp.eq.s32.totalorder %s18, 0
    %p191 = por %p189, %p190
    %p192 = scmp.le.s32.totalorder 1, %s12
    %p193 = scmp.lt.s32.totalorder %s12, 3
    %p194 = pnand %p192, %p193
    %p195 = pneg %p194
    // Predicated region
    $region9: #{lenet_forward.3} parent=5 // pred_check
      _
    $region10: #{lenet_forward.3} parent=5 // pred_check_branch
      %197 = sbr.rel (%p194) target = $region12
    $region11: #{lenet_forward.3} parent=5 // pred_region
      %s198 = ssub.s32 %s12, 1
      // Predicated region
      $region13: #{lenet_forward.3} parent=11 // pred_check
        %p199 = pneg %p137
      $region14: #{lenet_forward.3} parent=11 // pred_check_branch
        %201 = sbr.rel (%p199) target = $region16
      $region15: #{lenet_forward.3} parent=11 // pred_region
        _
      $region16: #{lenet_forward.3} parent=11 // pred_fallthru
        _
      // Predicated region
      $region17: #{lenet_forward.3} parent=11 // pred_check
        %p202 = pneg %p158
      $region18: #{lenet_forward.3} parent=11 // pred_check_branch
        %204 = sbr.rel (%p202) target = $region20
      $region19: #{lenet_forward.3} parent=11 // pred_region
        _
      $region20: #{lenet_forward.3} parent=11 // pred_fallthru
        _
    $region12: #{lenet_forward.3} parent=5 // pred_fallthru
      _
    %p205 = scmp.lt.s32.totalorder %s12, 2
    // Predicated region
    $region21: #{lenet_forward.3} parent=5 // pred_check
      %p206 = pneg %p205
    $region22: #{lenet_forward.3} parent=5 // pred_check_branch
      %208 = sbr.rel (%p206) target = $region24
    $region23: #{lenet_forward.3} parent=5 // pred_region
      // Predicated region
      $region25: #{lenet_forward.3} parent=23 // pred_check
        %p209 = pneg %p32
      $region26: #{lenet_forward.3} parent=23 // pred_check_branch
        %211 = sbr.rel (%p209) target = $region28
      $region27: #{lenet_forward.3} parent=23 // pred_region
        %s212 = smul.u32 26, %s12
        %p213 = scmp.lt.s32.totalorder %s212, 51
        %s214 = scalar_select %p213, %s212, 51
        %s215 = smul.addr %s214, 4
        %s216 = scalar_lea.vmem %s0, %s215
        %s217 = smul.u32 26, %s12
      $region28: #{lenet_forward.3} parent=23 // pred_fallthru
        _
      // Predicated region
      $region29: #{lenet_forward.3} parent=23 // pred_check
        %p218 = pneg %p58
      $region30: #{lenet_forward.3} parent=23 // pred_check_branch
        %220 = sbr.rel (%p218) target = $region32
      $region31: #{lenet_forward.3} parent=23 // pred_region
        %s221 = smul.u32 26, %s12
        %p222 = scmp.lt.s32.totalorder %s221, 51
        %s223 = scalar_select %p222, %s221, 51
        %s224 = smul.addr %s223, 4
        %s225 = scalar_lea.vmem %s1, %s224
        %s226 = smul.u32 26, %s12
      $region32: #{lenet_forward.3} parent=23 // pred_fallthru
        _
      // Predicated region
      $region33: #{lenet_forward.3} parent=23 // pred_check
        %p227 = pneg %p84
      $region34: #{lenet_forward.3} parent=23 // pred_check_branch
        %229 = sbr.rel (%p227) target = $region36
      $region35: #{lenet_forward.3} parent=23 // pred_region
        %s230 = smul.u32 26, %s12
        %p231 = scmp.lt.s32.totalorder %s230, 51
        %s232 = scalar_select %p231, %s230, 51
        %s233 = smul.addr %s232, 4
        %s234 = scalar_lea.vmem %s2, %s233
        %s235 = smul.u32 26, %s12
      $region36: #{lenet_forward.3} parent=23 // pred_fallthru
        _
      // Predicated region
      $region37: #{lenet_forward.3} parent=23 // pred_check
        %p236 = pneg %p110
      $region38: #{lenet_forward.3} parent=23 // pred_check_branch
        %238 = sbr.rel (%p236) target = $region40
      $region39: #{lenet_forward.3} parent=23 // pred_region
        %s239 = smul.u32 26, %s12
        %p240 = scmp.lt.s32.totalorder %s239, 51
        %s241 = scalar_select %p240, %s239, 51
        %s242 = smul.addr %s241, 4
        %s243 = scalar_lea.vmem %s3, %s242
        %s244 = smul.u32 26, %s12
      $region40: #{lenet_forward.3} parent=23 // pred_fallthru
        _
    $region24: #{lenet_forward.3} parent=5 // pred_fallthru
      _
    %p245 = scmp.le.s32.totalorder 1, %s12
    %p246 = scmp.lt.s32.totalorder %s12, 3
    %p247 = pnand %p245, %p246
    %p248 = pneg %p247
    // Predicated region
    $region41: #{lenet_forward.3} parent=5 // pred_check
      _
    $region42: #{lenet_forward.3} parent=5 // pred_check_branch
      %250 = sbr.rel (%p247) target = $region44
    $region43: #{lenet_forward.3} parent=5 // pred_region
      %s251 = ssub.s32 %s12, 1
      %s252 = smul.u32 26, %s17
      %p253 = scmp.lt.s32.totalorder %s252, 51
      %s254 = scalar_select %p253, %s252, 51
      %s255 = smul.addr %s254, 4
      %s256 = scalar_lea.vmem %s0, %s255
      %p257 = pneg %p38
      %p258 = pneg %p35
      %s259 = smul.u32 26, %s17
      %p260 = scmp.lt.s32.totalorder %s259, 51
      %s261 = scalar_select %p260, %s259, 51
      %s262 = smul.addr %s261, 4
      %s263 = scalar_lea.vmem %s1, %s262
      %p264 = pneg %p64
      %p265 = pneg %p61
      %s266 = smul.u32 26, %s17
      %p267 = scmp.lt.s32.totalorder %s266, 51
      %s268 = scalar_select %p267, %s266, 51
      %s269 = smul.addr %s268, 4
      %s270 = scalar_lea.vmem %s2, %s269
      %p271 = pneg %p90
      %p272 = pneg %p87
      %s273 = smul.u32 26, %s17
      %p274 = scmp.lt.s32.totalorder %s273, 51
      %s275 = scalar_select %p274, %s273, 51
      %s276 = smul.addr %s275, 4
      %s277 = scalar_lea.vmem %s3, %s276
      %p278 = pneg %p116
      %p279 = pneg %p113
      %p280 = pneg %p137
      %p281 = pneg %p134
      %p282 = pneg %p158
      %p283 = pneg %p155
      %p284 = pneg %p184
      %p285 = pneg %p181
      %s286 = smul.u32 26, %s17
      %p287 = scmp.lt.s32.totalorder %s286, 51
      %s288 = scalar_select %p287, %s286, 51
      %s289 = smul.addr %s288, 4
      %s290 = scalar_lea.vmem %s6, %s289
      %s291 = smul.u32 26, %s17
      %p292 = scmp.lt.s32.totalorder %s291, 51
      %s293 = scalar_select %p292, %s291, 51
      %s294 = smul.addr %s293, 4
      %s295 = scalar_lea.vmem %s0, %s294
      %s296 = smul.u32 26, %s17
      %s297 = smul.u32 26, %s17
      %p298 = scmp.lt.s32.totalorder %s297, 51
      %s299 = scalar_select %p298, %s297, 51
      %s300 = smul.addr %s299, 4
      %s301 = scalar_lea.vmem %s1, %s300
      %s302 = smul.u32 26, %s17
      %s303 = smul.u32 26, %s17
      %p304 = scmp.lt.s32.totalorder %s303, 51
      %s305 = scalar_select %p304, %s303, 51
      %s306 = smul.addr %s305, 4
      %s307 = scalar_lea.vmem %s2, %s306
      %s308 = smul.u32 26, %s17
      %s309 = smul.u32 26, %s17
      %p310 = scmp.lt.s32.totalorder %s309, 51
      %s311 = scalar_select %p310, %s309, 51
      %s312 = smul.addr %s311, 4
      %s313 = scalar_lea.vmem %s3, %s312
      %s314 = smul.u32 26, %s17
      %s315 = smul.u32 26, %s17
      %p316 = scmp.lt.s32.totalorder %s315, 51
      %s317 = scalar_select %p316, %s315, 51
      %s318 = smul.addr %s317, 4
      %s319 = scalar_lea.vmem %s6, %s318
      %s320 = smul.u32 26, %s17
      %v322 = vld [vmem:[%s295] sm:$0xf]
      %v323 = vld [vmem:[%s295 + $0x4] sm:$0xf]
      %v324 = vld [vmem:[%s295 + $0x8] sm:$0xf]
      %v325 = vld [vmem:[%s295 + $0xc] sm:$0xf]
      %v326 = vld [vmem:[%s295 + $0x10] sm:$0xf]
      %v327 = vld [vmem:[%s295 + $0x14] sm:$0xf]
      %v328 = vld [vmem:[%s295 + $0x18] sm:$0xf]
      %v329 = vld [vmem:[%s295 + $0x1c] sm:$0xf]
      %v330 = vld [vmem:[%s295 + $0x20] sm:$0xf]
      %v331 = vld [vmem:[%s295 + $0x24] sm:$0xf]
      %v332 = vld [vmem:[%s295 + $0x28] sm:$0xf]
      %v333 = vld [vmem:[%s295 + $0x2c] sm:$0xf]
      %v334 = vld [vmem:[%s295 + $0x30] sm:$0xf]
      %v335 = vld [vmem:[%s295 + $0x34] sm:$0xf]
      %v336 = vld [vmem:[%s295 + $0x38] sm:$0xf]
      %v337 = vld [vmem:[%s295 + $0x3c] sm:$0xf]
      %v338 = vld [vmem:[%s295 + $0x40] sm:$0xf]
      %v339 = vld [vmem:[%s295 + $0x44] sm:$0xf]
      %v340 = vld [vmem:[%s295 + $0x48] sm:$0xf]
      %v341 = vld [vmem:[%s295 + $0x4c] sm:$0xf]
      %v342 = vld [vmem:[%s295 + $0x50] sm:$0xf]
      %v343 = vld [vmem:[%s295 + $0x54] sm:$0xf]
      %v344 = vld [vmem:[%s295 + $0x58] sm:$0xf]
      %v345 = vld [vmem:[%s295 + $0x5c] sm:$0xf]
      %v346 = vld [vmem:[%s295 + $0x60] sm:$0xf]
      %v347 = vld [vmem:[%s295 + $0x64] sm:$0xf]
      %v348 = vld [vmem:[%s301] sm:$0xf]
      %v349 = vld [vmem:[%s301 + $0x4] sm:$0xf]
      %v350 = vld [vmem:[%s301 + $0x8] sm:$0xf]
      %v351 = vld [vmem:[%s301 + $0xc] sm:$0xf]
      %v352 = vld [vmem:[%s301 + $0x10] sm:$0xf]
      %v353 = vld [vmem:[%s301 + $0x14] sm:$0xf]
      %v354 = vld [vmem:[%s301 + $0x18] sm:$0xf]
      %v355 = vld [vmem:[%s301 + $0x1c] sm:$0xf]
      %v356 = vld [vmem:[%s301 + $0x20] sm:$0xf]
      %v357 = vld [vmem:[%s301 + $0x24] sm:$0xf]
      %v358 = vld [vmem:[%s301 + $0x28] sm:$0xf]
      %v359 = vld [vmem:[%s301 + $0x2c] sm:$0xf]
      %v360 = vld [vmem:[%s301 + $0x30] sm:$0xf]
      %v361 = vld [vmem:[%s301 + $0x34] sm:$0xf]
      %v362 = vld [vmem:[%s301 + $0x38] sm:$0xf]
      %v363 = vld [vmem:[%s301 + $0x3c] sm:$0xf]
      %v364 = vld [vmem:[%s301 + $0x40] sm:$0xf]
      %v365 = vld [vmem:[%s301 + $0x44] sm:$0xf]
      %v366 = vld [vmem:[%s301 + $0x48] sm:$0xf]
      %v367 = vld [vmem:[%s301 + $0x4c] sm:$0xf]
      %v368 = vld [vmem:[%s301 + $0x50] sm:$0xf]
      %v369 = vld [vmem:[%s301 + $0x54] sm:$0xf]
      %v370 = vld [vmem:[%s301 + $0x58] sm:$0xf]
      %v371 = vld [vmem:[%s301 + $0x5c] sm:$0xf]
      %v372 = vld [vmem:[%s301 + $0x60] sm:$0xf]
      %v373 = vld [vmem:[%s301 + $0x64] sm:$0xf]
      %v374 = vld [vmem:[%s307] sm:$0xf]
      %v375 = vld [vmem:[%s307 + $0x4] sm:$0xf]
      %v376 = vld [vmem:[%s307 + $0x8] sm:$0xf]
      %v377 = vld [vmem:[%s307 + $0xc] sm:$0xf]
      %v378 = vld [vmem:[%s307 + $0x10] sm:$0xf]
      %v379 = vld [vmem:[%s307 + $0x14] sm:$0xf]
      %v380 = vld [vmem:[%s307 + $0x18] sm:$0xf]
      %v381 = vld [vmem:[%s307 + $0x1c] sm:$0xf]
      %v382 = vld [vmem:[%s307 + $0x20] sm:$0xf]
      %v383 = vld [vmem:[%s307 + $0x24] sm:$0xf]
      %v384 = vld [vmem:[%s307 + $0x28] sm:$0xf]
      %v385 = vld [vmem:[%s307 + $0x2c] sm:$0xf]
      %v386 = vld [vmem:[%s307 + $0x30] sm:$0xf]
      %v387 = vld [vmem:[%s307 + $0x34] sm:$0xf]
      %v388 = vld [vmem:[%s307 + $0x38] sm:$0xf]
      %v389 = vld [vmem:[%s307 + $0x3c] sm:$0xf]
      %v390 = vld [vmem:[%s307 + $0x40] sm:$0xf]
      %v391 = vld [vmem:[%s307 + $0x44] sm:$0xf]
      %v392 = vld [vmem:[%s307 + $0x48] sm:$0xf]
      %v393 = vld [vmem:[%s307 + $0x4c] sm:$0xf]
      %v394 = vld [vmem:[%s307 + $0x50] sm:$0xf]
      %v395 = vld [vmem:[%s307 + $0x54] sm:$0xf]
      %v396 = vld [vmem:[%s307 + $0x58] sm:$0xf]
      %v397 = vld [vmem:[%s307 + $0x5c] sm:$0xf]
      %v398 = vld [vmem:[%s307 + $0x60] sm:$0xf]
      %v399 = vld [vmem:[%s307 + $0x64] sm:$0xf]
      %v400 = vld [vmem:[%s313] sm:$0xf]
      %v401 = vld [vmem:[%s313 + $0x4] sm:$0xf]
      %v402 = vld [vmem:[%s313 + $0x8] sm:$0xf]
      %v403 = vld [vmem:[%s313 + $0xc] sm:$0xf]
      %v404 = vld [vmem:[%s313 + $0x10] sm:$0xf]
      %v405 = vld [vmem:[%s313 + $0x14] sm:$0xf]
      %v406 = vld [vmem:[%s313 + $0x18] sm:$0xf]
      %v407 = vld [vmem:[%s313 + $0x1c] sm:$0xf]
      %v408 = vld [vmem:[%s313 + $0x20] sm:$0xf]
      %v409 = vld [vmem:[%s313 + $0x24] sm:$0xf]
      %v410 = vld [vmem:[%s313 + $0x28] sm:$0xf]
      %v411 = vld [vmem:[%s313 + $0x2c] sm:$0xf]
      %v412 = vld [vmem:[%s313 + $0x30] sm:$0xf]
      %v413 = vld [vmem:[%s313 + $0x34] sm:$0xf]
      %v414 = vld [vmem:[%s313 + $0x38] sm:$0xf]
      %v415 = vld [vmem:[%s313 + $0x3c] sm:$0xf]
      %v416 = vld [vmem:[%s313 + $0x40] sm:$0xf]
      %v417 = vld [vmem:[%s313 + $0x44] sm:$0xf]
      %v418 = vld [vmem:[%s313 + $0x48] sm:$0xf]
      %v419 = vld [vmem:[%s313 + $0x4c] sm:$0xf]
      %v420 = vld [vmem:[%s313 + $0x50] sm:$0xf]
      %v421 = vld [vmem:[%s313 + $0x54] sm:$0xf]
      %v422 = vld [vmem:[%s313 + $0x58] sm:$0xf]
      %v423 = vld [vmem:[%s313 + $0x5c] sm:$0xf]
      %v424 = vld [vmem:[%s313 + $0x60] sm:$0xf]
      %v425 = vld [vmem:[%s313 + $0x64] sm:$0xf]
      %v452 = vunpack.c.l.b16 %v322
      %v453 = vunpack.c.l.b16 %v323
      %v454 = vunpack.c.l.b16 %v324
      %v455 = vunpack.c.l.b16 %v325
      %v456 = vunpack.c.l.b16 %v326
      %v457 = vunpack.c.l.b16 %v327
      %v458 = vunpack.c.l.b16 %v328
      %v459 = vunpack.c.l.b16 %v329
      %v460 = vunpack.c.l.b16 %v330
      %v461 = vunpack.c.l.b16 %v331
      %v462 = vunpack.c.l.b16 %v332
      %v463 = vunpack.c.l.b16 %v333
      %v464 = vunpack.c.l.b16 %v334
      %v465 = vunpack.c.l.b16 %v335
      %v466 = vunpack.c.l.b16 %v336
      %v467 = vunpack.c.l.b16 %v337
      %v468 = vunpack.c.l.b16 %v338
      %v469 = vunpack.c.l.b16 %v339
      %v470 = vunpack.c.l.b16 %v340
      %v471 = vunpack.c.l.b16 %v341
      %v472 = vunpack.c.l.b16 %v342
      %v473 = vunpack.c.l.b16 %v343
      %v474 = vunpack.c.l.b16 %v344
      %v475 = vunpack.c.l.b16 %v345
      %v476 = vunpack.c.l.b16 %v346
      %v477 = vunpack.c.l.b16 %v347
      %v478 = vpack.c.b16 %v453, %v452
      %v479 = vpack.c.b16 %v455, %v454
      %v480 = vpack.c.b16 %v457, %v456
      %v481 = vpack.c.b16 %v459, %v458
      %v482 = vpack.c.b16 %v461, %v460
      %v483 = vpack.c.b16 %v463, %v462
      %v484 = vpack.c.b16 %v465, %v464
      %v485 = vpack.c.b16 %v467, %v466
      %v486 = vpack.c.b16 %v469, %v468
      %v487 = vpack.c.b16 %v471, %v470
      %v488 = vpack.c.b16 %v473, %v472
      %v489 = vpack.c.b16 %v475, %v474
      %v490 = vpack.c.b16 %v477, %v476
      %v517 = vunpack.c.l.b16 %v348
      %v518 = vunpack.c.l.b16 %v349
      %v519 = vunpack.c.l.b16 %v350
      %v520 = vunpack.c.l.b16 %v351
      %v521 = vunpack.c.l.b16 %v352
      %v522 = vunpack.c.l.b16 %v353
      %v523 = vunpack.c.l.b16 %v354
      %v524 = vunpack.c.l.b16 %v355
      %v525 = vunpack.c.l.b16 %v356
      %v526 = vunpack.c.l.b16 %v357
      %v527 = vunpack.c.l.b16 %v358
      %v528 = vunpack.c.l.b16 %v359
      %v529 = vunpack.c.l.b16 %v360
      %v530 = vunpack.c.l.b16 %v361
      %v531 = vunpack.c.l.b16 %v362
      %v532 = vunpack.c.l.b16 %v363
      %v533 = vunpack.c.l.b16 %v364
      %v534 = vunpack.c.l.b16 %v365
      %v535 = vunpack.c.l.b16 %v366
      %v536 = vunpack.c.l.b16 %v367
      %v537 = vunpack.c.l.b16 %v368
      %v538 = vunpack.c.l.b16 %v369
      %v539 = vunpack.c.l.b16 %v370
      %v540 = vunpack.c.l.b16 %v371
      %v541 = vunpack.c.l.b16 %v372
      %v542 = vunpack.c.l.b16 %v373
      %v543 = vpack.c.b16 %v518, %v517
      %v544 = vpack.c.b16 %v520, %v519
      %v545 = vpack.c.b16 %v522, %v521
      %v546 = vpack.c.b16 %v524, %v523
      %v547 = vpack.c.b16 %v526, %v525
      %v548 = vpack.c.b16 %v528, %v527
      %v549 = vpack.c.b16 %v530, %v529
      %v550 = vpack.c.b16 %v532, %v531
      %v551 = vpack.c.b16 %v534, %v533
      %v552 = vpack.c.b16 %v536, %v535
      %v553 = vpack.c.b16 %v538, %v537
      %v554 = vpack.c.b16 %v540, %v539
      %v555 = vpack.c.b16 %v542, %v541
      %v582 = vunpack.c.l.b16 %v374
      %v583 = vunpack.c.l.b16 %v375
      %v584 = vunpack.c.l.b16 %v376
      %v585 = vunpack.c.l.b16 %v377
      %v586 = vunpack.c.l.b16 %v378
      %v587 = vunpack.c.l.b16 %v379
      %v588 = vunpack.c.l.b16 %v380
      %v589 = vunpack.c.l.b16 %v381
      %v590 = vunpack.c.l.b16 %v382
      %v591 = vunpack.c.l.b16 %v383
      %v592 = vunpack.c.l.b16 %v384
      %v593 = vunpack.c.l.b16 %v385
      %v594 = vunpack.c.l.b16 %v386
      %v595 = vunpack.c.l.b16 %v387
      %v596 = vunpack.c.l.b16 %v388
      %v597 = vunpack.c.l.b16 %v389
      %v598 = vunpack.c.l.b16 %v390
      %v599 = vunpack.c.l.b16 %v391
      %v600 = vunpack.c.l.b16 %v392
      %v601 = vunpack.c.l.b16 %v393
      %v602 = vunpack.c.l.b16 %v394
      %v603 = vunpack.c.l.b16 %v395
      %v604 = vunpack.c.l.b16 %v396
      %v605 = vunpack.c.l.b16 %v397
      %v606 = vunpack.c.l.b16 %v398
      %v607 = vunpack.c.l.b16 %v399
      %v608 = vpack.c.b16 %v583, %v582
      %v609 = vpack.c.b16 %v585, %v584
      %v610 = vpack.c.b16 %v587, %v586
      %v611 = vpack.c.b16 %v589, %v588
      %v612 = vpack.c.b16 %v591, %v590
      %v613 = vpack.c.b16 %v593, %v592
      %v614 = vpack.c.b16 %v595, %v594
      %v615 = vpack.c.b16 %v597, %v596
      %v616 = vpack.c.b16 %v599, %v598
      %v617 = vpack.c.b16 %v601, %v600
      %v618 = vpack.c.b16 %v603, %v602
      %v619 = vpack.c.b16 %v605, %v604
      %v620 = vpack.c.b16 %v607, %v606
      %v647 = vunpack.c.l.b16 %v400
      %v648 = vunpack.c.l.b16 %v401
      %v649 = vunpack.c.l.b16 %v402
      %v650 = vunpack.c.l.b16 %v403
      %v651 = vunpack.c.l.b16 %v404
      %v652 = vunpack.c.l.b16 %v405
      %v653 = vunpack.c.l.b16 %v406
      %v654 = vunpack.c.l.b16 %v407
      %v655 = vunpack.c.l.b16 %v408
      %v656 = vunpack.c.l.b16 %v409
      %v657 = vunpack.c.l.b16 %v410
      %v658 = vunpack.c.l.b16 %v411
      %v659 = vunpack.c.l.b16 %v412
      %v660 = vunpack.c.l.b16 %v413
      %v661 = vunpack.c.l.b16 %v414
      %v662 = vunpack.c.l.b16 %v415
      %v663 = vunpack.c.l.b16 %v416
      %v664 = vunpack.c.l.b16 %v417
      %v665 = vunpack.c.l.b16 %v418
      %v666 = vunpack.c.l.b16 %v419
      %v667 = vunpack.c.l.b16 %v420
      %v668 = vunpack.c.l.b16 %v421
      %v669 = vunpack.c.l.b16 %v422
      %v670 = vunpack.c.l.b16 %v423
      %v671 = vunpack.c.l.b16 %v424
      %v672 = vunpack.c.l.b16 %v425
      %v673 = vpack.c.b16 %v648, %v647
      %v674 = vpack.c.b16 %v650, %v649
      %v675 = vpack.c.b16 %v652, %v651
      %v676 = vpack.c.b16 %v654, %v653
      %v677 = vpack.c.b16 %v656, %v655
      %v678 = vpack.c.b16 %v658, %v657
      %v679 = vpack.c.b16 %v660, %v659
      %v680 = vpack.c.b16 %v662, %v661
      %v681 = vpack.c.b16 %v664, %v663
      %v682 = vpack.c.b16 %v666, %v665
      %v683 = vpack.c.b16 %v668, %v667
      %v684 = vpack.c.b16 %v670, %v669
      %v685 = vpack.c.b16 %v672, %v671
      %v686 = vld [vmem:[%s4] sm:$0xf]
      %v687 = vld [vmem:[%s4 + $0x4] sm:$0xf]
      %v688 = vld [vmem:[%s4 + $0x8] sm:$0xf]
      %v689 = vld [vmem:[%s4 + $0xc] sm:$0xf]
      %v690 = vld [vmem:[%s4 + $0x10] sm:$0xf]
      %v691 = vld [vmem:[%s4 + $0x14] sm:$0xf]
      %v692 = vld [vmem:[%s4 + $0x18] sm:$0xf]
      %v693 = vld [vmem:[%s4 + $0x1c] sm:$0xf]
      %v694 = vld [vmem:[%s4 + $0x20] sm:$0xf]
      %v695 = vld [vmem:[%s4 + $0x24] sm:$0x3]
      %v706 = vunpack.c.l.b16 %v686
      %v707 = vunpack.c.l.b16 %v687
      %v708 = vunpack.c.l.b16 %v688
      %v709 = vunpack.c.l.b16 %v689
      %v710 = vunpack.c.l.b16 %v690
      %v711 = vunpack.c.l.b16 %v691
      %v712 = vunpack.c.l.b16 %v692
      %v713 = vunpack.c.l.b16 %v693
      %v714 = vunpack.c.l.b16 %v694
      %v715 = vunpack.c.l.b16 %v695
      %v716 = vpack.c.b16 %v707, %v706
      %v717 = vpack.c.b16 %v709, %v708
      %v718 = vpack.c.b16 %v711, %v710
      %v719 = vpack.c.b16 %v713, %v712
      %v720 = vpack.c.b16 %v715, %v714
      %vm725 = vcmask 613376
      %v727 = vsel %vm725, %v478, 0
      %v730 = vsel %vm725, %v479, 0
      %v733 = vsel %vm725, %v480, 0
      %v736 = vsel %vm725, %v481, 0
      %v739 = vsel %vm725, %v482, 0
      %v742 = vsel %vm725, %v483, 0
      %v745 = vsel %vm725, %v484, 0
      %v748 = vsel %vm725, %v485, 0
      %v751 = vsel %vm725, %v486, 0
      %v754 = vsel %vm725, %v487, 0
      %v757 = vsel %vm725, %v488, 0
      %v760 = vsel %vm725, %v489, 0
      %v763 = vsel %vm725, %v490, 0
      %v766 = vsel %vm725, %v543, 0
      %v769 = vsel %vm725, %v544, 0
      %v772 = vsel %vm725, %v545, 0
      %v775 = vsel %vm725, %v546, 0
      %v778 = vsel %vm725, %v547, 0
      %v781 = vsel %vm725, %v548, 0
      %v784 = vsel %vm725, %v549, 0
      %v787 = vsel %vm725, %v550, 0
      %v790 = vsel %vm725, %v551, 0
      %v793 = vsel %vm725, %v552, 0
      %v796 = vsel %vm725, %v553, 0
      %v799 = vsel %vm725, %v554, 0
      %v802 = vsel %vm725, %v555, 0
      %v805 = vsel %vm725, %v608, 0
      %v808 = vsel %vm725, %v609, 0
      %v811 = vsel %vm725, %v610, 0
      %v814 = vsel %vm725, %v611, 0
      %v817 = vsel %vm725, %v612, 0
      %v820 = vsel %vm725, %v613, 0
      %v823 = vsel %vm725, %v614, 0
      %v826 = vsel %vm725, %v615, 0
      %v829 = vsel %vm725, %v616, 0
      %v832 = vsel %vm725, %v617, 0
      %v835 = vsel %vm725, %v618, 0
      %v838 = vsel %vm725, %v619, 0
      %v841 = vsel %vm725, %v620, 0
      %v844 = vsel %vm725, %v673, 0
      %v847 = vsel %vm725, %v674, 0
      %v850 = vsel %vm725, %v675, 0
      %v853 = vsel %vm725, %v676, 0
      %v856 = vsel %vm725, %v677, 0
      %v859 = vsel %vm725, %v678, 0
      %v862 = vsel %vm725, %v679, 0
      %v865 = vsel %vm725, %v680, 0
      %v868 = vsel %vm725, %v681, 0
      %v871 = vsel %vm725, %v682, 0
      %v874 = vsel %vm725, %v683, 0
      %v877 = vsel %vm725, %v684, 0
      %v880 = vsel %vm725, %v685, 0
      %vm882 = vcmask 1044480
      %vm883 = vcmask 1045504
      %v884 = vsel %vm882, 4294967295, 65535
      %v885 = vsel %vm883, %v884, 0
      %v887 = vand.u32 %v720, %v885
      %889 = vmatpush.bf16.msra.mxu0 0
      %890 = vmatpush.bf16.msra.mxu0 0
      %891 = vmatpush.bf16.msra.mxu0 0
      %892 = vmatpush.bf16.msra.mxu0 %v887
      %893 = vmatpush.bf16.msra.mxu0 %v719
      %894 = vmatpush.bf16.msra.mxu0 %v718
      %895 = vmatpush.bf16.msra.mxu0 %v717
      %896 = vmatpush.bf16.msra.mxu0 %v716
      %897 = vmatmul.bf16.gmra.mxu0 %v727
      %v898 = vpop.f32.mrf.mxu0
      %v899 = vadd.f32 0.0, %v898
      %v900 = vpop.f32.mrf.mxu0
      %v901 = vadd.f32 0.0, %v900
      %902 = vmatmul.bf16.gmra.mxu0 %v730
      %v903 = vpop.f32.mrf.mxu0
      %v904 = vadd.f32 0.0, %v903
      %v905 = vpop.f32.mrf.mxu0
      %v906 = vadd.f32 0.0, %v905
      %907 = vmatmul.bf16.gmra.mxu0 %v733
      %v908 = vpop.f32.mrf.mxu0
      %v909 = vadd.f32 0.0, %v908
      %v910 = vpop.f32.mrf.mxu0
      %v911 = vadd.f32 0.0, %v910
      %912 = vmatmul.bf16.gmra.mxu0 %v736
      %v913 = vpop.f32.mrf.mxu0
      %v914 = vadd.f32 0.0, %v913
      %v915 = vpop.f32.mrf.mxu0
      %v916 = vadd.f32 0.0, %v915
      %917 = vmatmul.bf16.gmra.mxu0 %v739
      %v918 = vpop.f32.mrf.mxu0
      %v919 = vadd.f32 0.0, %v918
      %v920 = vpop.f32.mrf.mxu0
      %v921 = vadd.f32 0.0, %v920
      %922 = vmatmul.bf16.gmra.mxu0 %v742
      %v923 = vpop.f32.mrf.mxu0
      %v924 = vadd.f32 0.0, %v923
      %v925 = vpop.f32.mrf.mxu0
      %v926 = vadd.f32 0.0, %v925
      %927 = vmatmul.bf16.gmra.mxu0 %v745
      %v928 = vpop.f32.mrf.mxu0
      %v929 = vadd.f32 0.0, %v928
      %v930 = vpop.f32.mrf.mxu0
      %v931 = vadd.f32 0.0, %v930
      %932 = vmatmul.bf16.gmra.mxu0 %v748
      %v933 = vpop.f32.mrf.mxu0
      %v934 = vadd.f32 0.0, %v933
      %v935 = vpop.f32.mrf.mxu0
      %v936 = vadd.f32 0.0, %v935
      %937 = vmatmul.bf16.gmra.mxu0 %v751
      %v938 = vpop.f32.mrf.mxu0
      %v939 = vadd.f32 0.0, %v938
      %v940 = vpop.f32.mrf.mxu0
      %v941 = vadd.f32 0.0, %v940
      %942 = vmatmul.bf16.gmra.mxu0 %v754
      %v943 = vpop.f32.mrf.mxu0
      %v944 = vadd.f32 0.0, %v943
      %v945 = vpop.f32.mrf.mxu0
      %v946 = vadd.f32 0.0, %v945
      %947 = vmatmul.bf16.gmra.mxu0 %v757
      %v948 = vpop.f32.mrf.mxu0
      %v949 = vadd.f32 0.0, %v948
      %v950 = vpop.f32.mrf.mxu0
      %v951 = vadd.f32 0.0, %v950
      %952 = vmatmul.bf16.gmra.mxu0 %v760
      %v953 = vpop.f32.mrf.mxu0
      %v954 = vadd.f32 0.0, %v953
      %v955 = vpop.f32.mrf.mxu0
      %v956 = vadd.f32 0.0, %v955
      %957 = vmatmul.bf16.gmra.mxu0 %v763
      %v958 = vpop.f32.mrf.mxu0
      %v959 = vadd.f32 0.0, %v958
      %v960 = vpop.f32.mrf.mxu0
      %v961 = vadd.f32 0.0, %v960
      %962 = vmatmul.bf16.gmra.mxu0 %v766
      %v963 = vpop.f32.mrf.mxu0
      %v964 = vadd.f32 0.0, %v963
      %v965 = vpop.f32.mrf.mxu0
      %v966 = vadd.f32 0.0, %v965
      %967 = vmatmul.bf16.gmra.mxu0 %v769
      %v968 = vpop.f32.mrf.mxu0
      %v969 = vadd.f32 0.0, %v968
      %v970 = vpop.f32.mrf.mxu0
      %v971 = vadd.f32 0.0, %v970
      %972 = vmatmul.bf16.gmra.mxu0 %v772
      %v973 = vpop.f32.mrf.mxu0
      %v974 = vadd.f32 0.0, %v973
      %v975 = vpop.f32.mrf.mxu0
      %v976 = vadd.f32 0.0, %v975
      %977 = vmatmul.bf16.gmra.mxu0 %v775
      %v978 = vpop.f32.mrf.mxu0
      %v979 = vadd.f32 0.0, %v978
      %v980 = vpop.f32.mrf.mxu0
      %v981 = vadd.f32 0.0, %v980
      %982 = vmatmul.bf16.gmra.mxu0 %v778
      %v983 = vpop.f32.mrf.mxu0
      %v984 = vadd.f32 0.0, %v983
      %v985 = vpop.f32.mrf.mxu0
      %v986 = vadd.f32 0.0, %v985
      %987 = vmatmul.bf16.gmra.mxu0 %v781
      %v988 = vpop.f32.mrf.mxu0
      %v989 = vadd.f32 0.0, %v988
      %v990 = vpop.f32.mrf.mxu0
      %v991 = vadd.f32 0.0, %v990
      %992 = vmatmul.bf16.gmra.mxu0 %v784
      %v993 = vpop.f32.mrf.mxu0
      %v994 = vadd.f32 0.0, %v993
      %v995 = vpop.f32.mrf.mxu0
      %v996 = vadd.f32 0.0, %v995
      %997 = vmatmul.bf16.gmra.mxu0 %v787
      %v998 = vpop.f32.mrf.mxu0
      %v999 = vadd.f32 0.0, %v998
      %v1000 = vpop.f32.mrf.mxu0
      %v1001 = vadd.f32 0.0, %v1000
      %1002 = vmatmul.bf16.gmra.mxu0 %v790
      %v1003 = vpop.f32.mrf.mxu0
      %v1004 = vadd.f32 0.0, %v1003
      %v1005 = vpop.f32.mrf.mxu0
      %v1006 = vadd.f32 0.0, %v1005
      %1007 = vmatmul.bf16.gmra.mxu0 %v793
      %v1008 = vpop.f32.mrf.mxu0
      %v1009 = vadd.f32 0.0, %v1008
      %v1010 = vpop.f32.mrf.mxu0
      %v1011 = vadd.f32 0.0, %v1010
      %1012 = vmatmul.bf16.gmra.mxu0 %v796
      %v1013 = vpop.f32.mrf.mxu0
      %v1014 = vadd.f32 0.0, %v1013
      %v1015 = vpop.f32.mrf.mxu0
      %v1016 = vadd.f32 0.0, %v1015
      %1017 = vmatmul.bf16.gmra.mxu0 %v799
      %v1018 = vpop.f32.mrf.mxu0
      %v1019 = vadd.f32 0.0, %v1018
      %v1020 = vpop.f32.mrf.mxu0
      %v1021 = vadd.f32 0.0, %v1020
      %1022 = vmatmul.bf16.gmra.mxu0 %v802
      %v1023 = vpop.f32.mrf.mxu0
      %v1024 = vadd.f32 0.0, %v1023
      %v1025 = vpop.f32.mrf.mxu0
      %v1026 = vadd.f32 0.0, %v1025
      %1027 = vmatmul.bf16.gmra.mxu0 %v805
      %v1028 = vpop.f32.mrf.mxu0
      %v1029 = vadd.f32 0.0, %v1028
      %v1030 = vpop.f32.mrf.mxu0
      %v1031 = vadd.f32 0.0, %v1030
      %1032 = vmatmul.bf16.gmra.mxu0 %v808
      %v1033 = vpop.f32.mrf.mxu0
      %v1034 = vadd.f32 0.0, %v1033
      %v1035 = vpop.f32.mrf.mxu0
      %v1036 = vadd.f32 0.0, %v1035
      %1037 = vmatmul.bf16.gmra.mxu0 %v811
      %v1038 = vpop.f32.mrf.mxu0
      %v1039 = vadd.f32 0.0, %v1038
      %v1040 = vpop.f32.mrf.mxu0
      %v1041 = vadd.f32 0.0, %v1040
      %1042 = vmatmul.bf16.gmra.mxu0 %v814
      %v1043 = vpop.f32.mrf.mxu0
      %v1044 = vadd.f32 0.0, %v1043
      %v1045 = vpop.f32.mrf.mxu0
      %v1046 = vadd.f32 0.0, %v1045
      %1047 = vmatmul.bf16.gmra.mxu0 %v817
      %v1048 = vpop.f32.mrf.mxu0
      %v1049 = vadd.f32 0.0, %v1048
      %v1050 = vpop.f32.mrf.mxu0
      %v1051 = vadd.f32 0.0, %v1050
      %1052 = vmatmul.bf16.gmra.mxu0 %v820
      %v1053 = vpop.f32.mrf.mxu0
      %v1054 = vadd.f32 0.0, %v1053
      %v1055 = vpop.f32.mrf.mxu0
      %v1056 = vadd.f32 0.0, %v1055
      %1057 = vmatmul.bf16.gmra.mxu0 %v823
      %v1058 = vpop.f32.mrf.mxu0
      %v1059 = vadd.f32 0.0, %v1058
      %v1060 = vpop.f32.mrf.mxu0
      %v1061 = vadd.f32 0.0, %v1060
      %1062 = vmatmul.bf16.gmra.mxu0 %v826
      %v1063 = vpop.f32.mrf.mxu0
      %v1064 = vadd.f32 0.0, %v1063
      %v1065 = vpop.f32.mrf.mxu0
      %v1066 = vadd.f32 0.0, %v1065
      %1067 = vmatmul.bf16.gmra.mxu0 %v829
      %v1068 = vpop.f32.mrf.mxu0
      %v1069 = vadd.f32 0.0, %v1068
      %v1070 = vpop.f32.mrf.mxu0
      %v1071 = vadd.f32 0.0, %v1070
      %1072 = vmatmul.bf16.gmra.mxu0 %v832
      %v1073 = vpop.f32.mrf.mxu0
      %v1074 = vadd.f32 0.0, %v1073
      %v1075 = vpop.f32.mrf.mxu0
      %v1076 = vadd.f32 0.0, %v1075
      %1077 = vmatmul.bf16.gmra.mxu0 %v835
      %v1078 = vpop.f32.mrf.mxu0
      %v1079 = vadd.f32 0.0, %v1078
      %v1080 = vpop.f32.mrf.mxu0
      %v1081 = vadd.f32 0.0, %v1080
      %1082 = vmatmul.bf16.gmra.mxu0 %v838
      %v1083 = vpop.f32.mrf.mxu0
      %v1084 = vadd.f32 0.0, %v1083
      %v1085 = vpop.f32.mrf.mxu0
      %v1086 = vadd.f32 0.0, %v1085
      %1087 = vmatmul.bf16.gmra.mxu0 %v841
      %v1088 = vpop.f32.mrf.mxu0
      %v1089 = vadd.f32 0.0, %v1088
      %v1090 = vpop.f32.mrf.mxu0
      %v1091 = vadd.f32 0.0, %v1090
      %1092 = vmatmul.bf16.gmra.mxu0 %v844
      %v1093 = vpop.f32.mrf.mxu0
      %v1094 = vadd.f32 0.0, %v1093
      %v1095 = vpop.f32.mrf.mxu0
      %v1096 = vadd.f32 0.0, %v1095
      %1097 = vmatmul.bf16.gmra.mxu0 %v847
      %v1098 = vpop.f32.mrf.mxu0
      %v1099 = vadd.f32 0.0, %v1098
      %v1100 = vpop.f32.mrf.mxu0
      %v1101 = vadd.f32 0.0, %v1100
      %1102 = vmatmul.bf16.gmra.mxu0 %v850
      %v1103 = vpop.f32.mrf.mxu0
      %v1104 = vadd.f32 0.0, %v1103
      %v1105 = vpop.f32.mrf.mxu0
      %v1106 = vadd.f32 0.0, %v1105
      %1107 = vmatmul.bf16.gmra.mxu0 %v853
      %v1108 = vpop.f32.mrf.mxu0
      %v1109 = vadd.f32 0.0, %v1108
      %v1110 = vpop.f32.mrf.mxu0
      %v1111 = vadd.f32 0.0, %v1110
      %1112 = vmatmul.bf16.gmra.mxu0 %v856
      %v1113 = vpop.f32.mrf.mxu0
      %v1114 = vadd.f32 0.0, %v1113
      %v1115 = vpop.f32.mrf.mxu0
      %v1116 = vadd.f32 0.0, %v1115
      %1117 = vmatmul.bf16.gmra.mxu0 %v859
      %v1118 = vpop.f32.mrf.mxu0
      %v1119 = vadd.f32 0.0, %v1118
      %v1120 = vpop.f32.mrf.mxu0
      %v1121 = vadd.f32 0.0, %v1120
      %1122 = vmatmul.bf16.gmra.mxu0 %v862
      %v1123 = vpop.f32.mrf.mxu0
      %v1124 = vadd.f32 0.0, %v1123
      %v1125 = vpop.f32.mrf.mxu0
      %v1126 = vadd.f32 0.0, %v1125
      %1127 = vmatmul.bf16.gmra.mxu0 %v865
      %v1128 = vpop.f32.mrf.mxu0
      %v1129 = vadd.f32 0.0, %v1128
      %v1130 = vpop.f32.mrf.mxu0
      %v1131 = vadd.f32 0.0, %v1130
      %1132 = vmatmul.bf16.gmra.mxu0 %v868
      %v1133 = vpop.f32.mrf.mxu0
      %v1134 = vadd.f32 0.0, %v1133
      %v1135 = vpop.f32.mrf.mxu0
      %v1136 = vadd.f32 0.0, %v1135
      %1137 = vmatmul.bf16.gmra.mxu0 %v871
      %v1138 = vpop.f32.mrf.mxu0
      %v1139 = vadd.f32 0.0, %v1138
      %v1140 = vpop.f32.mrf.mxu0
      %v1141 = vadd.f32 0.0, %v1140
      %1142 = vmatmul.bf16.gmra.mxu0 %v874
      %v1143 = vpop.f32.mrf.mxu0
      %v1144 = vadd.f32 0.0, %v1143
      %v1145 = vpop.f32.mrf.mxu0
      %v1146 = vadd.f32 0.0, %v1145
      %1147 = vmatmul.bf16.gmra.mxu0 %v877
      %v1148 = vpop.f32.mrf.mxu0
      %v1149 = vadd.f32 0.0, %v1148
      %v1150 = vpop.f32.mrf.mxu0
      %v1151 = vadd.f32 0.0, %v1150
      %1152 = vmatmul.bf16.gmra.mxu0 %v880
      %v1153 = vpop.f32.mrf.mxu0
      %v1154 = vadd.f32 0.0, %v1153
      %v1155 = vpop.f32.mrf.mxu0
      %v1156 = vadd.f32 0.0, %v1155
      %1157 = vdwg.mxu0
      %vm1158 = vcmask 130048
      %v1159 = vsel %vm1158, %v899, -inf
      %v1160 = vsel %vm1158, %v964, -inf
      %v1161 = vmax.f32 %v1159, %v1160
      %v1162 = vsel %vm1158, %v1029, -inf
      %v1163 = vmax.f32 %v1161, %v1162
      %v1164 = vsel %vm1158, %v1094, -inf
      %v1165 = vmax.f32 %v1163, %v1164
      %v1166 = vsel %vm1158, %v901, -inf
      %v1167 = vsel %vm1158, %v966, -inf
      %v1168 = vmax.f32 %v1166, %v1167
      %v1169 = vsel %vm1158, %v1031, -inf
      %v1170 = vmax.f32 %v1168, %v1169
      %v1171 = vsel %vm1158, %v1096, -inf
      %v1172 = vmax.f32 %v1170, %v1171
      %v1173 = vsel %vm1158, %v904, -inf
      %v1174 = vsel %vm1158, %v969, -inf
      %v1175 = vmax.f32 %v1173, %v1174
      %v1176 = vsel %vm1158, %v1034, -inf
      %v1177 = vmax.f32 %v1175, %v1176
      %v1178 = vsel %vm1158, %v1099, -inf
      %v1179 = vmax.f32 %v1177, %v1178
      %v1180 = vsel %vm1158, %v906, -inf
      %v1181 = vsel %vm1158, %v971, -inf
      %v1182 = vmax.f32 %v1180, %v1181
      %v1183 = vsel %vm1158, %v1036, -inf
      %v1184 = vmax.f32 %v1182, %v1183
      %v1185 = vsel %vm1158, %v1101, -inf
      %v1186 = vmax.f32 %v1184, %v1185
      %v1187 = vsel %vm1158, %v909, -inf
      %v1188 = vsel %vm1158, %v974, -inf
      %v1189 = vmax.f32 %v1187, %v1188
      %v1190 = vsel %vm1158, %v1039, -inf
      %v1191 = vmax.f32 %v1189, %v1190
      %v1192 = vsel %vm1158, %v1104, -inf
      %v1193 = vmax.f32 %v1191, %v1192
      %v1194 = vsel %vm1158, %v911, -inf
      %v1195 = vsel %vm1158, %v976, -inf
      %v1196 = vmax.f32 %v1194, %v1195
      %v1197 = vsel %vm1158, %v1041, -inf
      %v1198 = vmax.f32 %v1196, %v1197
      %v1199 = vsel %vm1158, %v1106, -inf
      %v1200 = vmax.f32 %v1198, %v1199
      %v1201 = vsel %vm1158, %v914, -inf
      %v1202 = vsel %vm1158, %v979, -inf
      %v1203 = vmax.f32 %v1201, %v1202
      %v1204 = vsel %vm1158, %v1044, -inf
      %v1205 = vmax.f32 %v1203, %v1204
      %v1206 = vsel %vm1158, %v1109, -inf
      %v1207 = vmax.f32 %v1205, %v1206
      %v1208 = vsel %vm1158, %v916, -inf
      %v1209 = vsel %vm1158, %v981, -inf
      %v1210 = vmax.f32 %v1208, %v1209
      %v1211 = vsel %vm1158, %v1046, -inf
      %v1212 = vmax.f32 %v1210, %v1211
      %v1213 = vsel %vm1158, %v1111, -inf
      %v1214 = vmax.f32 %v1212, %v1213
      %v1215 = vsel %vm1158, %v919, -inf
      %v1216 = vsel %vm1158, %v984, -inf
      %v1217 = vmax.f32 %v1215, %v1216
      %v1218 = vsel %vm1158, %v1049, -inf
      %v1219 = vmax.f32 %v1217, %v1218
      %v1220 = vsel %vm1158, %v1114, -inf
      %v1221 = vmax.f32 %v1219, %v1220
      %v1222 = vsel %vm1158, %v921, -inf
      %v1223 = vsel %vm1158, %v986, -inf
      %v1224 = vmax.f32 %v1222, %v1223
      %v1225 = vsel %vm1158, %v1051, -inf
      %v1226 = vmax.f32 %v1224, %v1225
      %v1227 = vsel %vm1158, %v1116, -inf
      %v1228 = vmax.f32 %v1226, %v1227
      %v1229 = vsel %vm1158, %v924, -inf
      %v1230 = vsel %vm1158, %v989, -inf
      %v1231 = vmax.f32 %v1229, %v1230
      %v1232 = vsel %vm1158, %v1054, -inf
      %v1233 = vmax.f32 %v1231, %v1232
      %v1234 = vsel %vm1158, %v1119, -inf
      %v1235 = vmax.f32 %v1233, %v1234
      %v1236 = vsel %vm1158, %v926, -inf
      %v1237 = vsel %vm1158, %v991, -inf
      %v1238 = vmax.f32 %v1236, %v1237
      %v1239 = vsel %vm1158, %v1056, -inf
      %v1240 = vmax.f32 %v1238, %v1239
      %v1241 = vsel %vm1158, %v1121, -inf
      %v1242 = vmax.f32 %v1240, %v1241
      %v1243 = vsel %vm1158, %v929, -inf
      %v1244 = vsel %vm1158, %v994, -inf
      %v1245 = vmax.f32 %v1243, %v1244
      %v1246 = vsel %vm1158, %v1059, -inf
      %v1247 = vmax.f32 %v1245, %v1246
      %v1248 = vsel %vm1158, %v1124, -inf
      %v1249 = vmax.f32 %v1247, %v1248
      %v1250 = vsel %vm1158, %v931, -inf
      %v1251 = vsel %vm1158, %v996, -inf
      %v1252 = vmax.f32 %v1250, %v1251
      %v1253 = vsel %vm1158, %v1061, -inf
      %v1254 = vmax.f32 %v1252, %v1253
      %v1255 = vsel %vm1158, %v1126, -inf
      %v1256 = vmax.f32 %v1254, %v1255
      %v1257 = vsel %vm1158, %v934, -inf
      %v1258 = vsel %vm1158, %v999, -inf
      %v1259 = vmax.f32 %v1257, %v1258
      %v1260 = vsel %vm1158, %v1064, -inf
      %v1261 = vmax.f32 %v1259, %v1260
      %v1262 = vsel %vm1158, %v1129, -inf
      %v1263 = vmax.f32 %v1261, %v1262
      %v1264 = vsel %vm1158, %v936, -inf
      %v1265 = vsel %vm1158, %v1001, -inf
      %v1266 = vmax.f32 %v1264, %v1265
      %v1267 = vsel %vm1158, %v1066, -inf
      %v1268 = vmax.f32 %v1266, %v1267
      %v1269 = vsel %vm1158, %v1131, -inf
      %v1270 = vmax.f32 %v1268, %v1269
      %v1271 = vsel %vm1158, %v939, -inf
      %v1272 = vsel %vm1158, %v1004, -inf
      %v1273 = vmax.f32 %v1271, %v1272
      %v1274 = vsel %vm1158, %v1069, -inf
      %v1275 = vmax.f32 %v1273, %v1274
      %v1276 = vsel %vm1158, %v1134, -inf
      %v1277 = vmax.f32 %v1275, %v1276
      %v1278 = vsel %vm1158, %v941, -inf
      %v1279 = vsel %vm1158, %v1006, -inf
      %v1280 = vmax.f32 %v1278, %v1279
      %v1281 = vsel %vm1158, %v1071, -inf
      %v1282 = vmax.f32 %v1280, %v1281
      %v1283 = vsel %vm1158, %v1136, -inf
      %v1284 = vmax.f32 %v1282, %v1283
      %v1285 = vsel %vm1158, %v944, -inf
      %v1286 = vsel %vm1158, %v1009, -inf
      %v1287 = vmax.f32 %v1285, %v1286
      %v1288 = vsel %vm1158, %v1074, -inf
      %v1289 = vmax.f32 %v1287, %v1288
      %v1290 = vsel %vm1158, %v1139, -inf
      %v1291 = vmax.f32 %v1289, %v1290
      %v1292 = vsel %vm1158, %v946, -inf
      %v1293 = vsel %vm1158, %v1011, -inf
      %v1294 = vmax.f32 %v1292, %v1293
      %v1295 = vsel %vm1158, %v1076, -inf
      %v1296 = vmax.f32 %v1294, %v1295
      %v1297 = vsel %vm1158, %v1141, -inf
      %v1298 = vmax.f32 %v1296, %v1297
      %v1299 = vsel %vm1158, %v949, -inf
      %v1300 = vsel %vm1158, %v1014, -inf
      %v1301 = vmax.f32 %v1299, %v1300
      %v1302 = vsel %vm1158, %v1079, -inf
      %v1303 = vmax.f32 %v1301, %v1302
      %v1304 = vsel %vm1158, %v1144, -inf
      %v1305 = vmax.f32 %v1303, %v1304
      %v1306 = vsel %vm1158, %v951, -inf
      %v1307 = vsel %vm1158, %v1016, -inf
      %v1308 = vmax.f32 %v1306, %v1307
      %v1309 = vsel %vm1158, %v1081, -inf
      %v1310 = vmax.f32 %v1308, %v1309
      %v1311 = vsel %vm1158, %v1146, -inf
      %v1312 = vmax.f32 %v1310, %v1311
      %v1313 = vsel %vm1158, %v954, -inf
      %v1314 = vsel %vm1158, %v1019, -inf
      %v1315 = vmax.f32 %v1313, %v1314
      %v1316 = vsel %vm1158, %v1084, -inf
      %v1317 = vmax.f32 %v1315, %v1316
      %v1318 = vsel %vm1158, %v1149, -inf
      %v1319 = vmax.f32 %v1317, %v1318
      %v1320 = vsel %vm1158, %v956, -inf
      %v1321 = vsel %vm1158, %v1021, -inf
      %v1322 = vmax.f32 %v1320, %v1321
      %v1323 = vsel %vm1158, %v1086, -inf
      %v1324 = vmax.f32 %v1322, %v1323
      %v1325 = vsel %vm1158, %v1151, -inf
      %v1326 = vmax.f32 %v1324, %v1325
      %v1327 = vsel %vm1158, %v959, -inf
      %v1328 = vsel %vm1158, %v1024, -inf
      %v1329 = vmax.f32 %v1327, %v1328
      %v1330 = vsel %vm1158, %v1089, -inf
      %v1331 = vmax.f32 %v1329, %v1330
      %v1332 = vsel %vm1158, %v1154, -inf
      %v1333 = vmax.f32 %v1331, %v1332
      %v1334 = vsel %vm1158, %v961, -inf
      %v1335 = vsel %vm1158, %v1026, -inf
      %v1336 = vmax.f32 %v1334, %v1335
      %v1337 = vsel %vm1158, %v1091, -inf
      %v1338 = vmax.f32 %v1336, %v1337
      %v1339 = vsel %vm1158, %v1156, -inf
      %v1340 = vmax.f32 %v1338, %v1339
      %v1341 = vld [vmem:[%s5] sm:$0x1]
      %v1343 = vperm.slane %v1341, 0
      %v1345 = vadd.f32 %v1165, %v1343
      %v1346 = vadd.f32 %v1172, %v1343
      %v1347 = vadd.f32 %v1179, %v1343
      %v1348 = vadd.f32 %v1186, %v1343
      %v1349 = vadd.f32 %v1193, %v1343
      %v1350 = vadd.f32 %v1200, %v1343
      %v1351 = vadd.f32 %v1207, %v1343
      %v1352 = vadd.f32 %v1214, %v1343
      %v1353 = vadd.f32 %v1221, %v1343
      %v1354 = vadd.f32 %v1228, %v1343
      %v1355 = vadd.f32 %v1235, %v1343
      %v1356 = vadd.f32 %v1242, %v1343
      %v1357 = vadd.f32 %v1249, %v1343
      %v1358 = vadd.f32 %v1256, %v1343
      %v1359 = vadd.f32 %v1263, %v1343
      %v1360 = vadd.f32 %v1270, %v1343
      %v1361 = vadd.f32 %v1277, %v1343
      %v1362 = vadd.f32 %v1284, %v1343
      %v1363 = vadd.f32 %v1291, %v1343
      %v1364 = vadd.f32 %v1298, %v1343
      %v1365 = vadd.f32 %v1305, %v1343
      %v1366 = vadd.f32 %v1312, %v1343
      %v1367 = vadd.f32 %v1319, %v1343
      %v1368 = vadd.f32 %v1326, %v1343
      %v1369 = vadd.f32 %v1333, %v1343
      %v1370 = vadd.f32 %v1340, %v1343
      %v1371 = vmax.f32 %v1345, 0.0
      %v1372 = vmax.f32 %v1346, 0.0
      %v1373 = vmax.f32 %v1347, 0.0
      %v1374 = vmax.f32 %v1348, 0.0
      %v1375 = vmax.f32 %v1349, 0.0
      %v1376 = vmax.f32 %v1350, 0.0
      %v1377 = vmax.f32 %v1351, 0.0
      %v1378 = vmax.f32 %v1352, 0.0
      %v1379 = vmax.f32 %v1353, 0.0
      %v1380 = vmax.f32 %v1354, 0.0
      %v1381 = vmax.f32 %v1355, 0.0
      %v1382 = vmax.f32 %v1356, 0.0
      %v1383 = vmax.f32 %v1357, 0.0
      %v1384 = vmax.f32 %v1358, 0.0
      %v1385 = vmax.f32 %v1359, 0.0
      %v1386 = vmax.f32 %v1360, 0.0
      %v1387 = vmax.f32 %v1361, 0.0
      %v1388 = vmax.f32 %v1362, 0.0
      %v1389 = vmax.f32 %v1363, 0.0
      %v1390 = vmax.f32 %v1364, 0.0
      %v1391 = vmax.f32 %v1365, 0.0
      %v1392 = vmax.f32 %v1366, 0.0
      %v1393 = vmax.f32 %v1367, 0.0
      %v1394 = vmax.f32 %v1368, 0.0
      %v1395 = vmax.f32 %v1369, 0.0
      %v1396 = vmax.f32 %v1370, 0.0
      %v1397 = vpack.c.bf16 %v1371, %v1371
      %v1398 = vpack.c.bf16 %v1372, %v1372
      %v1399 = vpack.c.bf16 %v1373, %v1373
      %v1400 = vpack.c.bf16 %v1374, %v1374
      %v1401 = vpack.c.bf16 %v1375, %v1375
      %v1402 = vpack.c.bf16 %v1376, %v1376
      %v1403 = vpack.c.bf16 %v1377, %v1377
      %v1404 = vpack.c.bf16 %v1378, %v1378
      %v1405 = vpack.c.bf16 %v1379, %v1379
      %v1406 = vpack.c.bf16 %v1380, %v1380
      %v1407 = vpack.c.bf16 %v1381, %v1381
      %v1408 = vpack.c.bf16 %v1382, %v1382
      %v1409 = vpack.c.bf16 %v1383, %v1383
      %v1410 = vpack.c.bf16 %v1384, %v1384
      %v1411 = vpack.c.bf16 %v1385, %v1385
      %v1412 = vpack.c.bf16 %v1386, %v1386
      %v1413 = vpack.c.bf16 %v1387, %v1387
      %v1414 = vpack.c.bf16 %v1388, %v1388
      %v1415 = vpack.c.bf16 %v1389, %v1389
      %v1416 = vpack.c.bf16 %v1390, %v1390
      %v1417 = vpack.c.bf16 %v1391, %v1391
      %v1418 = vpack.c.bf16 %v1392, %v1392
      %v1419 = vpack.c.bf16 %v1393, %v1393
      %v1420 = vpack.c.bf16 %v1394, %v1394
      %v1421 = vpack.c.bf16 %v1395, %v1395
      %v1422 = vpack.c.bf16 %v1396, %v1396
      %vm1423 = vcmask 125952
      %1424 = vst.msk [vmem:[%s319] sm:$0xf] %vm1423, %v1397
      %1425 = vst.msk [vmem:[%s319 + $0x4] sm:$0xf] %vm1423, %v1398
      %1426 = vst.msk [vmem:[%s319 + $0x8] sm:$0xf] %vm1423, %v1399
      %1427 = vst.msk [vmem:[%s319 + $0xc] sm:$0xf] %vm1423, %v1400
      %1428 = vst.msk [vmem:[%s319 + $0x10] sm:$0xf] %vm1423, %v1401
      %1429 = vst.msk [vmem:[%s319 + $0x14] sm:$0xf] %vm1423, %v1402
      %1430 = vst.msk [vmem:[%s319 + $0x18] sm:$0xf] %vm1423, %v1403
      %1431 = vst.msk [vmem:[%s319 + $0x1c] sm:$0xf] %vm1423, %v1404
      %1432 = vst.msk [vmem:[%s319 + $0x20] sm:$0xf] %vm1423, %v1405
      %1433 = vst.msk [vmem:[%s319 + $0x24] sm:$0xf] %vm1423, %v1406
      %1434 = vst.msk [vmem:[%s319 + $0x28] sm:$0xf] %vm1423, %v1407
      %1435 = vst.msk [vmem:[%s319 + $0x2c] sm:$0xf] %vm1423, %v1408
      %1436 = vst.msk [vmem:[%s319 + $0x30] sm:$0xf] %vm1423, %v1409
      %1437 = vst.msk [vmem:[%s319 + $0x34] sm:$0xf] %vm1423, %v1410
      %1438 = vst.msk [vmem:[%s319 + $0x38] sm:$0xf] %vm1423, %v1411
      %1439 = vst.msk [vmem:[%s319 + $0x3c] sm:$0xf] %vm1423, %v1412
      %1440 = vst.msk [vmem:[%s319 + $0x40] sm:$0xf] %vm1423, %v1413
      %1441 = vst.msk [vmem:[%s319 + $0x44] sm:$0xf] %vm1423, %v1414
      %1442 = vst.msk [vmem:[%s319 + $0x48] sm:$0xf] %vm1423, %v1415
      %1443 = vst.msk [vmem:[%s319 + $0x4c] sm:$0xf] %vm1423, %v1416
      %1444 = vst.msk [vmem:[%s319 + $0x50] sm:$0xf] %vm1423, %v1417
      %1445 = vst.msk [vmem:[%s319 + $0x54] sm:$0xf] %vm1423, %v1418
      %1446 = vst.msk [vmem:[%s319 + $0x58] sm:$0xf] %vm1423, %v1419
      %1447 = vst.msk [vmem:[%s319 + $0x5c] sm:$0xf] %vm1423, %v1420
      %1448 = vst.msk [vmem:[%s319 + $0x60] sm:$0xf] %vm1423, %v1421
      %1449 = vst.msk [vmem:[%s319 + $0x64] sm:$0xf] %vm1423, %v1422
      %s1450 = smul.u32 26, %s17
      %p1451 = scmp.lt.s32.totalorder %s1450, 51
      %s1452 = scalar_select %p1451, %s1450, 51
      %s1453 = smul.addr %s1452, 4
      %s1454 = scalar_lea.vmem %s6, %s1453
      // Predicated region
      $region45: #{lenet_forward.3} parent=43 // pred_check
        %p1455 = pneg %p181
      $region46: #{lenet_forward.3} parent=43 // pred_check_branch
        %1457 = sbr.rel (%p1455) target = $region48
      $region47: #{lenet_forward.3} parent=43 // pred_region
        %s1458 = smul.u32 26, %s17
      $region48: #{lenet_forward.3} parent=43 // pred_fallthru
        _
    $region44: #{lenet_forward.3} parent=5 // pred_fallthru
      _
    %p1459 = scmp.le.s32.totalorder 2, %s12
    // Predicated region
    $region49: #{lenet_forward.3} parent=5 // pred_check
      %p1460 = pneg %p1459
    $region50: #{lenet_forward.3} parent=5 // pred_check_branch
      %1462 = sbr.rel (%p1460) target = $region52
    $region51: #{lenet_forward.3} parent=5 // pred_region
      %s1463 = ssub.s32 %s12, 2
      // Predicated region
      $region53: #{lenet_forward.3} parent=51 // pred_check
        %p1464 = pneg %p187
      $region54: #{lenet_forward.3} parent=51 // pred_check_branch
        %1466 = sbr.rel (%p1464) target = $region56
      $region55: #{lenet_forward.3} parent=51 // pred_region
        %s1467 = smul.u32 26, %s18
        %p1468 = scmp.lt.s32.totalorder %s1467, 51
        %s1469 = scalar_select %p1468, %s1467, 51
        %s1470 = smul.addr %s1469, 4
        %s1471 = scalar_lea.vmem %s6, %s1470
      $region56: #{lenet_forward.3} parent=51 // pred_fallthru
        _
    $region52: #{lenet_forward.3} parent=5 // pred_fallthru
      _
  $region6: #{lenet_forward.3} parent=0 // loop_footer
    %s16 = sadd.s32 1, %s12
  $region7: #{lenet_forward.3} parent=0 // loop_footer_branch
    %11 = sbr.rel target = $region3
  $region8: #{lenet_forward.3} parent=0 // loop_exit
    _

// kernel: lenet_forward.4
$region0: #{lenet_forward.4}
  #allocation0 [shape = 'u32[]', space=smem, size = 0x4, offset = 0x4, fixed_abs, tag = 'smem constant byte address 0x4 - core index']
  #allocation1 [shape = 'u32[72,128]{1,0:T(1,128)}', space=vmem, size = 0x9000, scoped, tag = 'internal scratch']
  %s0 = inlined_call_operand.vmem [shape: bf16[64,400], index: 0, kind: input, shape index: {}]
  %s1 = inlined_call_operand.vmem [shape: bf16[64,400], index: 1, kind: input, shape index: {}]
  %s2 = inlined_call_operand.vmem [shape: bf16[64,400], index: 2, kind: input, shape index: {}]
  %s3 = inlined_call_operand.vmem [shape: bf16[64,400], index: 3, kind: input, shape index: {}]
  %s4 = inlined_call_operand.vmem [shape: bf16[400,32], index: 4, kind: input, shape index: {}]
  %s5 = inlined_call_operand.vmem [shape: f32[1,32], index: 5, kind: input, shape index: {}]
  %s6 = inlined_call_operand.vmem [shape: bf16[64,32], index: 6, kind: output, shape index: {}]
  %s7 = sld [smem:[#allocation0]]
  $region57: #{lenet_forward.4} parent=0
    _
  %s9 = ssub.s32 1, %s7
  %s10 = scalar_select 0, %s9, %s7
  loop: start=0, step=1, limit=4
  $region2: #{lenet_forward.4} parent=0 // loop_pre_header
    _
  $region3: #{lenet_forward.4} parent=0 // loop_header
    %s12 = sphi 0, %s16
    %p13 = scmp.ge.s32.totalorder %s12, 4
    %s22 = sphi 0, %s24
    %s25 = sphi 0, %s22
    %s26 = sphi 0, %s25
    %s42 = sphi 0, %s26
    %s48 = sphi 0, %s50
    %s51 = sphi 0, %s48
    %s52 = sphi 0, %s51
    %s68 = sphi 0, %s52
    %s74 = sphi 0, %s76
    %s77 = sphi 0, %s74
    %s78 = sphi 0, %s77
    %s94 = sphi 0, %s78
    %s100 = sphi 0, %s102
    %s103 = sphi 0, %s100
    %s104 = sphi 0, %s103
    %s120 = sphi 0, %s104
    %s124 = sphi 0, %s124
    %s126 = sphi 0, %s124
    %s127 = sphi 0, %s126
    %s141 = sphi 0, %s127
    %s145 = sphi 0, %s145
    %s147 = sphi 0, %s145
    %s148 = sphi 0, %s147
    %s162 = sphi 0, %s148
    %s168 = sphi 0, %s170
    %s171 = sphi 0, %s168
    %s172 = sphi 0, %s171
    %s188 = sphi 0, %s172
  $region4: #{lenet_forward.4} parent=0 // loop_header_branch
    %15 = sbr.rel (%p13) target = $region8
  $region5: #{lenet_forward.4} parent=0 // loop_body
    %s17 = ssub.s32 %s12, 1
    %s18 = ssub.s32 %s12, 2
    %s19 = sadd.s32 %s12, 1
    %s20 = ssub.s32 %s12, %s19
    %p21 = scmp.eq.s32.totalorder %s20, 0
    %s23 = sadd.s32 %s22, 1
    %s24 = scalar_select %p21, %s22, %s23
    %p27 = pneg %p21
    %p28 = scmp.eq.s32.totalorder %s12, 1
    %p29 = por %p27, %p28
    %p30 = scmp.ne.s32.totalorder %s22, %s25
    %p31 = scmp.eq.s32.totalorder %s12, 0
    %p32 = por %p30, %p31
    %p33 = scmp.ne.s32.totalorder %s22, %s25
    %p34 = scmp.eq.s32.totalorder %s17, 1
    %p35 = por %p33, %p34
    %p36 = scmp.ne.s32.totalorder %s25, %s26
    %p37 = scmp.eq.s32.totalorder %s17, 0
    %p38 = por %p36, %p37
    %p39 = scmp.ne.s32.totalorder %s25, %s26
    %p40 = scmp.eq.s32.totalorder %s18, 1
    %p41 = por %p39, %p40
    %p43 = scmp.ne.s32.totalorder %s26, %s42
    %p44 = scmp.eq.s32.totalorder %s18, 0
    %p45 = por %p43, %p44
    %s46 = ssub.s32 %s12, %s19
    %p47 = scmp.eq.s32.totalorder %s46, 0
    %s49 = sadd.s32 %s48, 1
    %s50 = scalar_select %p47, %s48, %s49
    %p53 = pneg %p47
    %p54 = scmp.eq.s32.totalorder %s12, 1
    %p55 = por %p53, %p54
    %p56 = scmp.ne.s32.totalorder %s48, %s51
    %p57 = scmp.eq.s32.totalorder %s12, 0
    %p58 = por %p56, %p57
    %p59 = scmp.ne.s32.totalorder %s48, %s51
    %p60 = scmp.eq.s32.totalorder %s17, 1
    %p61 = por %p59, %p60
    %p62 = scmp.ne.s32.totalorder %s51, %s52
    %p63 = scmp.eq.s32.totalorder %s17, 0
    %p64 = por %p62, %p63
    %p65 = scmp.ne.s32.totalorder %s51, %s52
    %p66 = scmp.eq.s32.totalorder %s18, 1
    %p67 = por %p65, %p66
    %p69 = scmp.ne.s32.totalorder %s52, %s68
    %p70 = scmp.eq.s32.totalorder %s18, 0
    %p71 = por %p69, %p70
    %s72 = ssub.s32 %s12, %s19
    %p73 = scmp.eq.s32.totalorder %s72, 0
    %s75 = sadd.s32 %s74, 1
    %s76 = scalar_select %p73, %s74, %s75
    %p79 = pneg %p73
    %p80 = scmp.eq.s32.totalorder %s12, 1
    %p81 = por %p79, %p80
    %p82 = scmp.ne.s32.totalorder %s74, %s77
    %p83 = scmp.eq.s32.totalorder %s12, 0
    %p84 = por %p82, %p83
    %p85 = scmp.ne.s32.totalorder %s74, %s77
    %p86 = scmp.eq.s32.totalorder %s17, 1
    %p87 = por %p85, %p86
    %p88 = scmp.ne.s32.totalorder %s77, %s78
    %p89 = scmp.eq.s32.totalorder %s17, 0
    %p90 = por %p88, %p89
    %p91 = scmp.ne.s32.totalorder %s77, %s78
    %p92 = scmp.eq.s32.totalorder %s18, 1
    %p93 = por %p91, %p92
    %p95 = scmp.ne.s32.totalorder %s78, %s94
    %p96 = scmp.eq.s32.totalorder %s18, 0
    %p97 = por %p95, %p96
    %s98 = ssub.s32 %s12, %s19
    %p99 = scmp.eq.s32.totalorder %s98, 0
    %s101 = sadd.s32 %s100, 1
    %s102 = scalar_select %p99, %s100, %s101
    %p105 = pneg %p99
    %p106 = scmp.eq.s32.totalorder %s12, 1
    %p107 = por %p105, %p106
    %p108 = scmp.ne.s32.totalorder %s100, %s103
    %p109 = scmp.eq.s32.totalorder %s12, 0
    %p110 = por %p108, %p109
    %p111 = scmp.ne.s32.totalorder %s100, %s103
    %p112 = scmp.eq.s32.totalorder %s17, 1
    %p113 = por %p111, %p112
    %p114 = scmp.ne.s32.totalorder %s103, %s104
    %p115 = scmp.eq.s32.totalorder %s17, 0
    %p116 = por %p114, %p115
    %p117 = scmp.ne.s32.totalorder %s103, %s104
    %p118 = scmp.eq.s32.totalorder %s18, 1
    %p119 = por %p117, %p118
    %p121 = scmp.ne.s32.totalorder %s104, %s120
    %p122 = scmp.eq.s32.totalorder %s18, 0
    %p123 = por %p121, %p122
    %s125 = sadd.s32 %s124, 1
    %p128 = scmp.eq.s32.totalorder %s12, 1
    %p129 = scmp.ne.s32.totalorder %s124, %s126
    %p130 = scmp.eq.s32.totalorder %s12, 0
    %p131 = por %p129, %p130
    %p132 = scmp.ne.s32.totalorder %s124, %s126
    %p133 = scmp.eq.s32.totalorder %s17, 1
    %p134 = por %p132, %p133
    %p135 = scmp.ne.s32.totalorder %s126, %s127
    %p136 = scmp.eq.s32.totalorder %s17, 0
    %p137 = por %p135, %p136
    %p138 = scmp.ne.s32.totalorder %s126, %s127
    %p139 = scmp.eq.s32.totalorder %s18, 1
    %p140 = por %p138, %p139
    %p142 = scmp.ne.s32.totalorder %s127, %s141
    %p143 = scmp.eq.s32.totalorder %s18, 0
    %p144 = por %p142, %p143
    %s146 = sadd.s32 %s145, 1
    %p149 = scmp.eq.s32.totalorder %s12, 1
    %p150 = scmp.ne.s32.totalorder %s145, %s147
    %p151 = scmp.eq.s32.totalorder %s12, 0
    %p152 = por %p150, %p151
    %p153 = scmp.ne.s32.totalorder %s145, %s147
    %p154 = scmp.eq.s32.totalorder %s17, 1
    %p155 = por %p153, %p154
    %p156 = scmp.ne.s32.totalorder %s147, %s148
    %p157 = scmp.eq.s32.totalorder %s17, 0
    %p158 = por %p156, %p157
    %p159 = scmp.ne.s32.totalorder %s147, %s148
    %p160 = scmp.eq.s32.totalorder %s18, 1
    %p161 = por %p159, %p160
    %p163 = scmp.ne.s32.totalorder %s148, %s162
    %p164 = scmp.eq.s32.totalorder %s18, 0
    %p165 = por %p163, %p164
    %s166 = ssub.s32 %s12, %s19
    %p167 = scmp.eq.s32.totalorder %s166, 0
    %s169 = sadd.s32 %s168, 1
    %s170 = scalar_select %p167, %s168, %s169
    %p173 = pneg %p167
    %p174 = scmp.eq.s32.totalorder %s12, 1
    %p175 = por %p173, %p174
    %p176 = scmp.ne.s32.totalorder %s168, %s171
    %p177 = scmp.eq.s32.totalorder %s12, 0
    %p178 = por %p176, %p177
    %p179 = scmp.ne.s32.totalorder %s168, %s171
    %p180 = scmp.eq.s32.totalorder %s17, 1
    %p181 = por %p179, %p180
    %p182 = scmp.ne.s32.totalorder %s171, %s172
    %p183 = scmp.eq.s32.totalorder %s17, 0
    %p184 = por %p182, %p183
    %p185 = scmp.ne.s32.totalorder %s171, %s172
    %p186 = scmp.eq.s32.totalorder %s18, 1
    %p187 = por %p185, %p186
    %p189 = scmp.ne.s32.totalorder %s172, %s188
    %p190 = scmp.eq.s32.totalorder %s18, 0
    %p191 = por %p189, %p190
    %p192 = scmp.le.s32.totalorder 1, %s12
    %p193 = scmp.lt.s32.totalorder %s12, 3
    %p194 = pnand %p192, %p193
    %p195 = pneg %p194
    // Predicated region
    $region9: #{lenet_forward.4} parent=5 // pred_check
      _
    $region10: #{lenet_forward.4} parent=5 // pred_check_branch
      %197 = sbr.rel (%p194) target = $region12
    $region11: #{lenet_forward.4} parent=5 // pred_region
      %s198 = ssub.s32 %s12, 1
      // Predicated region
      $region13: #{lenet_forward.4} parent=11 // pred_check
        %p199 = pneg %p137
      $region14: #{lenet_forward.4} parent=11 // pred_check_branch
        %201 = sbr.rel (%p199) target = $region16
      $region15: #{lenet_forward.4} parent=11 // pred_region
        _
      $region16: #{lenet_forward.4} parent=11 // pred_fallthru
        _
      // Predicated region
      $region17: #{lenet_forward.4} parent=11 // pred_check
        %p202 = pneg %p158
      $region18: #{lenet_forward.4} parent=11 // pred_check_branch
        %204 = sbr.rel (%p202) target = $region20
      $region19: #{lenet_forward.4} parent=11 // pred_region
        _
      $region20: #{lenet_forward.4} parent=11 // pred_fallthru
        _
    $region12: #{lenet_forward.4} parent=5 // pred_fallthru
      _
    %p205 = scmp.lt.s32.totalorder %s12, 2
    // Predicated region
    $region21: #{lenet_forward.4} parent=5 // pred_check
      %p206 = pneg %p205
    $region22: #{lenet_forward.4} parent=5 // pred_check_branch
      %208 = sbr.rel (%p206) target = $region24
    $region23: #{lenet_forward.4} parent=5 // pred_region
      // Predicated region
      $region25: #{lenet_forward.4} parent=23 // pred_check
        %p209 = pneg %p32
      $region26: #{lenet_forward.4} parent=23 // pred_check_branch
        %211 = sbr.rel (%p209) target = $region28
      $region27: #{lenet_forward.4} parent=23 // pred_region
        %s212 = smul.u32 4, %s12
        %p213 = scmp.lt.s32.totalorder %s212, 7
        %s214 = scalar_select %p213, %s212, 7
        %s215 = smul.addr %s214, 4
        %s216 = smul.addr %s215, 4
        %s217 = scalar_lea.vmem %s0, %s216
        %s218 = smul.u32 4, %s12
      $region28: #{lenet_forward.4} parent=23 // pred_fallthru
        _
      // Predicated region
      $region29: #{lenet_forward.4} parent=23 // pred_check
        %p219 = pneg %p58
      $region30: #{lenet_forward.4} parent=23 // pred_check_branch
        %221 = sbr.rel (%p219) target = $region32
      $region31: #{lenet_forward.4} parent=23 // pred_region
        %s222 = smul.u32 4, %s12
        %p223 = scmp.lt.s32.totalorder %s222, 7
        %s224 = scalar_select %p223, %s222, 7
        %s225 = smul.addr %s224, 4
        %s226 = smul.addr %s225, 4
        %s227 = scalar_lea.vmem %s1, %s226
        %s228 = smul.u32 4, %s12
      $region32: #{lenet_forward.4} parent=23 // pred_fallthru
        _
      // Predicated region
      $region33: #{lenet_forward.4} parent=23 // pred_check
        %p229 = pneg %p84
      $region34: #{lenet_forward.4} parent=23 // pred_check_branch
        %231 = sbr.rel (%p229) target = $region36
      $region35: #{lenet_forward.4} parent=23 // pred_region
        %s232 = smul.u32 4, %s12
        %p233 = scmp.lt.s32.totalorder %s232, 7
        %s234 = scalar_select %p233, %s232, 7
        %s235 = smul.addr %s234, 4
        %s236 = smul.addr %s235, 4
        %s237 = scalar_lea.vmem %s2, %s236
        %s238 = smul.u32 4, %s12
      $region36: #{lenet_forward.4} parent=23 // pred_fallthru
        _
      // Predicated region
      $region37: #{lenet_forward.4} parent=23 // pred_check
        %p239 = pneg %p110
      $region38: #{lenet_forward.4} parent=23 // pred_check_branch
        %241 = sbr.rel (%p239) target = $region40
      $region39: #{lenet_forward.4} parent=23 // pred_region
        %s242 = smul.u32 4, %s12
        %p243 = scmp.lt.s32.totalorder %s242, 7
        %s244 = scalar_select %p243, %s242, 7
        %s245 = smul.addr %s244, 4
        %s246 = smul.addr %s245, 4
        %s247 = scalar_lea.vmem %s3, %s246
        %s248 = smul.u32 4, %s12
      $region40: #{lenet_forward.4} parent=23 // pred_fallthru
        _
    $region24: #{lenet_forward.4} parent=5 // pred_fallthru
      _
    %p249 = scmp.le.s32.totalorder 1, %s12
    %p250 = scmp.lt.s32.totalorder %s12, 3
    %p251 = pnand %p249, %p250
    %p252 = pneg %p251
    // Predicated region
    $region41: #{lenet_forward.4} parent=5 // pred_check
      _
    $region42: #{lenet_forward.4} parent=5 // pred_check_branch
      %254 = sbr.rel (%p251) target = $region44
    $region43: #{lenet_forward.4} parent=5 // pred_region
      %s255 = ssub.s32 %s12, 1
      %s256 = smul.u32 4, %s17
      %p257 = scmp.lt.s32.totalorder %s256, 7
      %s258 = scalar_select %p257, %s256, 7
      %s259 = smul.addr %s258, 4
      %s260 = smul.addr %s259, 4
      %s261 = scalar_lea.vmem %s0, %s260
      %p262 = pneg %p38
      %p263 = pneg %p35
      %s264 = smul.u32 4, %s17
      %p265 = scmp.lt.s32.totalorder %s264, 7
      %s266 = scalar_select %p265, %s264, 7
      %s267 = smul.addr %s266, 4
      %s268 = smul.addr %s267, 4
      %s269 = scalar_lea.vmem %s1, %s268
      %p270 = pneg %p64
      %p271 = pneg %p61
      %s272 = smul.u32 4, %s17
      %p273 = scmp.lt.s32.totalorder %s272, 7
      %s274 = scalar_select %p273, %s272, 7
      %s275 = smul.addr %s274, 4
      %s276 = smul.addr %s275, 4
      %s277 = scalar_lea.vmem %s2, %s276
      %p278 = pneg %p90
      %p279 = pneg %p87
      %s280 = smul.u32 4, %s17
      %p281 = scmp.lt.s32.totalorder %s280, 7
      %s282 = scalar_select %p281, %s280, 7
      %s283 = smul.addr %s282, 4
      %s284 = smul.addr %s283, 4
      %s285 = scalar_lea.vmem %s3, %s284
      %p286 = pneg %p116
      %p287 = pneg %p113
      %p288 = pneg %p137
      %p289 = pneg %p134
      %p290 = pneg %p158
      %p291 = pneg %p155
      %p292 = pneg %p184
      %p293 = pneg %p181
      %s294 = smul.u32 4, %s17
      %p295 = scmp.lt.s32.totalorder %s294, 7
      %s296 = scalar_select %p295, %s294, 7
      %s297 = smul.addr %s296, 4
      %s298 = scalar_lea.vmem %s6, %s297
      %s299 = smul.u32 4, %s17
      %p300 = scmp.lt.s32.totalorder %s299, 7
      %s301 = scalar_select %p300, %s299, 7
      %s302 = smul.addr %s301, 4
      %s303 = smul.addr %s302, 4
      %s304 = scalar_lea.vmem %s0, %s303
      %s305 = smul.u32 4, %s17
      %s306 = smul.u32 4, %s17
      %p307 = scmp.lt.s32.totalorder %s306, 7
      %s308 = scalar_select %p307, %s306, 7
      %s309 = smul.addr %s308, 4
      %s310 = smul.addr %s309, 4
      %s311 = scalar_lea.vmem %s1, %s310
      %s312 = smul.u32 4, %s17
      %s313 = smul.u32 4, %s17
      %p314 = scmp.lt.s32.totalorder %s313, 7
      %s315 = scalar_select %p314, %s313, 7
      %s316 = smul.addr %s315, 4
      %s317 = smul.addr %s316, 4
      %s318 = scalar_lea.vmem %s2, %s317
      %s319 = smul.u32 4, %s17
      %s320 = smul.u32 4, %s17
      %p321 = scmp.lt.s32.totalorder %s320, 7
      %s322 = scalar_select %p321, %s320, 7
      %s323 = smul.addr %s322, 4
      %s324 = smul.addr %s323, 4
      %s325 = scalar_lea.vmem %s3, %s324
      %s326 = smul.u32 4, %s17
      %s327 = smul.u32 4, %s17
      %p328 = scmp.lt.s32.totalorder %s327, 7
      %s329 = scalar_select %p328, %s327, 7
      %s330 = smul.addr %s329, 4
      %s331 = scalar_lea.vmem %s6, %s330
      %s332 = smul.u32 4, %s17
      %v334 = vld [vmem:[%s304] sm:$0xff]
      %v335 = vld [vmem:[%s304 + $0x8] sm:$0xff]
      %v336 = vld [vmem:[%s304 + $0x10] sm:$0xff]
      %v337 = vld [vmem:[%s304 + $0x18] sm:$0xff]
      %v338 = vld [vmem:[%s304 + $0x20] sm:$0xff]
      %v339 = vld [vmem:[%s304 + $0x28] sm:$0xff]
      %v340 = vld [vmem:[%s304 + $0x30] sm:$0xff]
      %v341 = vld [vmem:[%s304 + $0x38] sm:$0xff]
      %v342 = vld [vmem:[%s311] sm:$0xff]
      %v343 = vld [vmem:[%s311 + $0x8] sm:$0xff]
      %v344 = vld [vmem:[%s311 + $0x10] sm:$0xff]
      %v345 = vld [vmem:[%s311 + $0x18] sm:$0xff]
      %v346 = vld [vmem:[%s311 + $0x20] sm:$0xff]
      %v347 = vld [vmem:[%s311 + $0x28] sm:$0xff]
      %v348 = vld [vmem:[%s311 + $0x30] sm:$0xff]
      %v349 = vld [vmem:[%s311 + $0x38] sm:$0xff]
      %v350 = vld [vmem:[%s318] sm:$0xff]
      %v351 = vld [vmem:[%s318 + $0x8] sm:$0xff]
      %v352 = vld [vmem:[%s318 + $0x10] sm:$0xff]
      %v353 = vld [vmem:[%s318 + $0x18] sm:$0xff]
      %v354 = vld [vmem:[%s318 + $0x20] sm:$0xff]
      %v355 = vld [vmem:[%s318 + $0x28] sm:$0xff]
      %v356 = vld [vmem:[%s318 + $0x30] sm:$0xff]
      %v357 = vld [vmem:[%s318 + $0x38] sm:$0xff]
      %v358 = vld [vmem:[%s325] sm:$0xff]
      %v359 = vld [vmem:[%s325 + $0x8] sm:$0xff]
      %v360 = vld [vmem:[%s325 + $0x10] sm:$0xff]
      %v361 = vld [vmem:[%s325 + $0x18] sm:$0xff]
      %v362 = vld [vmem:[%s325 + $0x20] sm:$0xff]
      %v363 = vld [vmem:[%s325 + $0x28] sm:$0xff]
      %v364 = vld [vmem:[%s325 + $0x30] sm:$0xff]
      %v365 = vld [vmem:[%s325 + $0x38] sm:$0xff]
      %v374 = vunpack.c.l.b16 %v334
      %v375 = vunpack.c.h.b16 %v334
      %v376 = vunpack.c.l.b16 %v335
      %v377 = vunpack.c.h.b16 %v335
      %v378 = vunpack.c.l.b16 %v336
      %v379 = vunpack.c.h.b16 %v336
      %v380 = vunpack.c.l.b16 %v337
      %v381 = vunpack.c.h.b16 %v337
      %v382 = vunpack.c.l.b16 %v338
      %v383 = vunpack.c.h.b16 %v338
      %v384 = vunpack.c.l.b16 %v339
      %v385 = vunpack.c.h.b16 %v339
      %v386 = vunpack.c.l.b16 %v340
      %v387 = vunpack.c.h.b16 %v340
      %v388 = vunpack.c.l.b16 %v341
      %v389 = vunpack.c.h.b16 %v341
      %v390 = vpack.c.b16 %v378, %v374
      %v391 = vpack.c.b16 %v379, %v375
      %v392 = vpack.c.b16 %v380, %v376
      %v393 = vpack.c.b16 %v381, %v377
      %v394 = vpack.c.b16 %v386, %v382
      %v395 = vpack.c.b16 %v387, %v383
      %v396 = vpack.c.b16 %v388, %v384
      %v397 = vpack.c.b16 %v389, %v385
      %v412 = vunpack.c.l.b16 %v342
      %v413 = vunpack.c.h.b16 %v342
      %v414 = vunpack.c.l.b16 %v343
      %v415 = vunpack.c.h.b16 %v343
      %v416 = vunpack.c.l.b16 %v344
      %v417 = vunpack.c.h.b16 %v344
      %v418 = vunpack.c.l.b16 %v345
      %v419 = vunpack.c.h.b16 %v345
      %v420 = vunpack.c.l.b16 %v346
      %v421 = vunpack.c.h.b16 %v346
      %v422 = vunpack.c.l.b16 %v347
      %v423 = vunpack.c.h.b16 %v347
      %v424 = vunpack.c.l.b16 %v348
      %v425 = vunpack.c.h.b16 %v348
      %v426 = vunpack.c.l.b16 %v349
      %v427 = vunpack.c.h.b16 %v349
      %v428 = vpack.c.b16 %v416, %v412
      %v429 = vpack.c.b16 %v417, %v413
      %v430 = vpack.c.b16 %v418, %v414
      %v431 = vpack.c.b16 %v419, %v415
      %v432 = vpack.c.b16 %v424, %v420
      %v433 = vpack.c.b16 %v425, %v421
      %v434 = vpack.c.b16 %v426, %v422
      %v435 = vpack.c.b16 %v427, %v423
      %v450 = vunpack.c.l.b16 %v350
      %v451 = vunpack.c.h.b16 %v350
      %v452 = vunpack.c.l.b16 %v351
      %v453 = vunpack.c.h.b16 %v351
      %v454 = vunpack.c.l.b16 %v352
      %v455 = vunpack.c.h.b16 %v352
      %v456 = vunpack.c.l.b16 %v353
      %v457 = vunpack.c.h.b16 %v353
      %v458 = vunpack.c.l.b16 %v354
      %v459 = vunpack.c.h.b16 %v354
      %v460 = vunpack.c.l.b16 %v355
      %v461 = vunpack.c.h.b16 %v355
      %v462 = vunpack.c.l.b16 %v356
      %v463 = vunpack.c.h.b16 %v356
      %v464 = vunpack.c.l.b16 %v357
      %v465 = vunpack.c.h.b16 %v357
      %v466 = vpack.c.b16 %v454, %v450
      %v467 = vpack.c.b16 %v455, %v451
      %v468 = vpack.c.b16 %v456, %v452
      %v469 = vpack.c.b16 %v457, %v453
      %v470 = vpack.c.b16 %v462, %v458
      %v471 = vpack.c.b16 %v463, %v459
      %v472 = vpack.c.b16 %v464, %v460
      %v473 = vpack.c.b16 %v465, %v461
      %v488 = vunpack.c.l.b16 %v358
      %v489 = vunpack.c.h.b16 %v358
      %v490 = vunpack.c.l.b16 %v359
      %v491 = vunpack.c.h.b16 %v359
      %v492 = vunpack.c.l.b16 %v360
      %v493 = vunpack.c.h.b16 %v360
      %v494 = vunpack.c.l.b16 %v361
      %v495 = vunpack.c.h.b16 %v361
      %v496 = vunpack.c.l.b16 %v362
      %v497 = vunpack.c.h.b16 %v362
      %v498 = vunpack.c.l.b16 %v363
      %v499 = vunpack.c.h.b16 %v363
      %v500 = vunpack.c.l.b16 %v364
      %v501 = vunpack.c.h.b16 %v364
      %v502 = vunpack.c.l.b16 %v365
      %v503 = vunpack.c.h.b16 %v365
      %v504 = vpack.c.b16 %v492, %v488
      %v505 = vpack.c.b16 %v493, %v489
      %v506 = vpack.c.b16 %v494, %v490
      %v507 = vpack.c.b16 %v495, %v491
      %v508 = vpack.c.b16 %v500, %v496
      %v509 = vpack.c.b16 %v501, %v497
      %v510 = vpack.c.b16 %v502, %v498
      %v511 = vpack.c.b16 %v503, %v499
      %v518 = vld [vmem:[%s4] sm:$0xf]
      %v519 = vld [vmem:[%s4 + $0x4] sm:$0xf]
      %v520 = vld [vmem:[%s4 + $0x8] sm:$0xf]
      %v521 = vld [vmem:[%s4 + $0xc] sm:$0xf]
      %v522 = vld [vmem:[%s4 + $0x10] sm:$0xf]
      %v523 = vld [vmem:[%s4 + $0x14] sm:$0xf]
      %v524 = vld [vmem:[%s4 + $0x18] sm:$0xf]
      %v525 = vld [vmem:[%s4 + $0x1c] sm:$0xf]
      %v526 = vld [vmem:[%s4 + $0x20] sm:$0xf]
      %v527 = vld [vmem:[%s4 + $0x24] sm:$0xf]
      %v528 = vld [vmem:[%s4 + $0x28] sm:$0xf]
      %v529 = vld [vmem:[%s4 + $0x2c] sm:$0xf]
      %v530 = vld [vmem:[%s4 + $0x30] sm:$0xf]
      %v531 = vld [vmem:[%s4 + $0x34] sm:$0xf]
      %v532 = vld [vmem:[%s4 + $0x38] sm:$0xf]
      %v533 = vld [vmem:[%s4 + $0x3c] sm:$0xf]
      %v534 = vld [vmem:[%s4 + $0x40] sm:$0xf]
      %v535 = vld [vmem:[%s4 + $0x44] sm:$0xf]
      %v536 = vld [vmem:[%s4 + $0x48] sm:$0xf]
      %v537 = vld [vmem:[%s4 + $0x4c] sm:$0xf]
      %v538 = vld [vmem:[%s4 + $0x50] sm:$0xf]
      %v539 = vld [vmem:[%s4 + $0x54] sm:$0xf]
      %v540 = vld [vmem:[%s4 + $0x58] sm:$0xf]
      %v541 = vld [vmem:[%s4 + $0x5c] sm:$0xf]
      %v542 = vld [vmem:[%s4 + $0x60] sm:$0xf]
      %v543 = vld [vmem:[%s4 + $0x64] sm:$0xf]
      %v544 = vld [vmem:[%s4 + $0x68] sm:$0xf]
      %v545 = vld [vmem:[%s4 + $0x6c] sm:$0xf]
      %v546 = vld [vmem:[%s4 + $0x70] sm:$0xf]
      %v547 = vld [vmem:[%s4 + $0x74] sm:$0xf]
      %v548 = vld [vmem:[%s4 + $0x78] sm:$0xf]
      %v549 = vld [vmem:[%s4 + $0x7c] sm:$0xf]
      %v550 = vld [vmem:[%s4 + $0x80] sm:$0xf]
      %v551 = vld [vmem:[%s4 + $0x84] sm:$0xf]
      %v552 = vld [vmem:[%s4 + $0x88] sm:$0xf]
      %v553 = vld [vmem:[%s4 + $0x8c] sm:$0xf]
      %v554 = vld [vmem:[%s4 + $0x90] sm:$0xf]
      %v555 = vld [vmem:[%s4 + $0x94] sm:$0xf]
      %v556 = vld [vmem:[%s4 + $0x98] sm:$0xf]
      %v557 = vld [vmem:[%s4 + $0x9c] sm:$0xf]
      %v558 = vld [vmem:[%s4 + $0xa0] sm:$0xf]
      %v559 = vld [vmem:[%s4 + $0xa4] sm:$0xf]
      %v560 = vld [vmem:[%s4 + $0xa8] sm:$0xf]
      %v561 = vld [vmem:[%s4 + $0xac] sm:$0xf]
      %v562 = vld [vmem:[%s4 + $0xb0] sm:$0xf]
      %v563 = vld [vmem:[%s4 + $0xb4] sm:$0xf]
      %v564 = vld [vmem:[%s4 + $0xb8] sm:$0xf]
      %v565 = vld [vmem:[%s4 + $0xbc] sm:$0xf]
      %v566 = vld [vmem:[%s4 + $0xc0] sm:$0xf]
      %v567 = vld [vmem:[%s4 + $0xc4] sm:$0xf]
      %v618 = vunpack.c.l.b16 %v518
      %v619 = vunpack.c.l.b16 %v519
      %v620 = vunpack.c.l.b16 %v520
      %v621 = vunpack.c.l.b16 %v521
      %v622 = vunpack.c.l.b16 %v522
      %v623 = vunpack.c.l.b16 %v523
      %v624 = vunpack.c.l.b16 %v524
      %v625 = vunpack.c.l.b16 %v525
      %v626 = vunpack.c.l.b16 %v526
      %v627 = vunpack.c.l.b16 %v527
      %v628 = vunpack.c.l.b16 %v528
      %v629 = vunpack.c.l.b16 %v529
      %v630 = vunpack.c.l.b16 %v530
      %v631 = vunpack.c.l.b16 %v531
      %v632 = vunpack.c.l.b16 %v532
      %v633 = vunpack.c.l.b16 %v533
      %v634 = vunpack.c.l.b16 %v534
      %v635 = vunpack.c.l.b16 %v535
      %v636 = vunpack.c.l.b16 %v536
      %v637 = vunpack.c.l.b16 %v537
      %v638 = vunpack.c.l.b16 %v538
      %v639 = vunpack.c.l.b16 %v539
      %v640 = vunpack.c.l.b16 %v540
      %v641 = vunpack.c.l.b16 %v541
      %v642 = vunpack.c.l.b16 %v542
      %v643 = vunpack.c.l.b16 %v543
      %v644 = vunpack.c.l.b16 %v544
      %v645 = vunpack.c.l.b16 %v545
      %v646 = vunpack.c.l.b16 %v546
      %v647 = vunpack.c.l.b16 %v547
      %v648 = vunpack.c.l.b16 %v548
      %v649 = vunpack.c.l.b16 %v549
      %v650 = vunpack.c.l.b16 %v550
      %v651 = vunpack.c.l.b16 %v551
      %v652 = vunpack.c.l.b16 %v552
      %v653 = vunpack.c.l.b16 %v553
      %v654 = vunpack.c.l.b16 %v554
      %v655 = vunpack.c.l.b16 %v555
      %v656 = vunpack.c.l.b16 %v556
      %v657 = vunpack.c.l.b16 %v557
      %v658 = vunpack.c.l.b16 %v558
      %v659 = vunpack.c.l.b16 %v559
      %v660 = vunpack.c.l.b16 %v560
      %v661 = vunpack.c.l.b16 %v561
      %v662 = vunpack.c.l.b16 %v562
      %v663 = vunpack.c.l.b16 %v563
      %v664 = vunpack.c.l.b16 %v564
      %v665 = vunpack.c.l.b16 %v565
      %v666 = vunpack.c.l.b16 %v566
      %v667 = vunpack.c.l.b16 %v567
      %v668 = vpack.c.b16 %v619, %v618
      %v669 = vpack.c.b16 %v621, %v620
      %v670 = vpack.c.b16 %v623, %v622
      %v671 = vpack.c.b16 %v625, %v624
      %v672 = vpack.c.b16 %v627, %v626
      %v673 = vpack.c.b16 %v629, %v628
      %v674 = vpack.c.b16 %v631, %v630
      %v675 = vpack.c.b16 %v633, %v632
      %v676 = vpack.c.b16 %v635, %v634
      %v677 = vpack.c.b16 %v637, %v636
      %v678 = vpack.c.b16 %v639, %v638
      %v679 = vpack.c.b16 %v641, %v640
      %v680 = vpack.c.b16 %v643, %v642
      %v681 = vpack.c.b16 %v645, %v644
      %v682 = vpack.c.b16 %v647, %v646
      %v683 = vpack.c.b16 %v649, %v648
      %v684 = vpack.c.b16 %v651, %v650
      %v685 = vpack.c.b16 %v653, %v652
      %v686 = vpack.c.b16 %v655, %v654
      %v687 = vpack.c.b16 %v657, %v656
      %v688 = vpack.c.b16 %v659, %v658
      %v689 = vpack.c.b16 %v661, %v660
      %v690 = vpack.c.b16 %v663, %v662
      %v691 = vpack.c.b16 %v665, %v664
      %v692 = vpack.c.b16 %v667, %v666
      %vm718 = vcmask 130048
      %v720 = vsel %vm718, %v393, 0
      %v723 = vsel %vm718, %v397, 0
      %v726 = vsel %vm718, %v431, 0
      %v729 = vsel %vm718, %v435, 0
      %v732 = vsel %vm718, %v469, 0
      %v735 = vsel %vm718, %v473, 0
      %v738 = vsel %vm718, %v507, 0
      %v741 = vsel %vm718, %v511, 0
      %743 = vmatpush.bf16.msra.mxu0 %v675
      %744 = vmatpush.bf16.msra.mxu0 %v674
      %745 = vmatpush.bf16.msra.mxu0 %v673
      %746 = vmatpush.bf16.msra.mxu0 %v672
      %747 = vmatpush.bf16.msra.mxu0 %v671
      %748 = vmatpush.bf16.msra.mxu0 %v670
      %749 = vmatpush.bf16.msra.mxu0 %v669
      %750 = vmatpush.bf16.msra.mxu0 %v668
      %751 = vmatmul.bf16.gmra.mxu0 %v390
      %v752 = vpop.f32.mrf.mxu0
      %v753 = vadd.f32 0.0, %v752
      %v754 = vpop.f32.mrf.mxu0
      %v755 = vadd.f32 0.0, %v754
      %756 = vmatmul.bf16.gmra.mxu0 %v394
      %v757 = vpop.f32.mrf.mxu0
      %v758 = vadd.f32 0.0, %v757
      %v759 = vpop.f32.mrf.mxu0
      %v760 = vadd.f32 0.0, %v759
      %761 = vmatmul.bf16.gmra.mxu0 %v428
      %v762 = vpop.f32.mrf.mxu0
      %v763 = vadd.f32 0.0, %v762
      %v764 = vpop.f32.mrf.mxu0
      %v765 = vadd.f32 0.0, %v764
      %766 = vmatmul.bf16.gmra.mxu0 %v432
      %v767 = vpop.f32.mrf.mxu0
      %v768 = vadd.f32 0.0, %v767
      %v769 = vpop.f32.mrf.mxu0
      %v770 = vadd.f32 0.0, %v769
      %771 = vmatmul.bf16.gmra.mxu0 %v466
      %v772 = vpop.f32.mrf.mxu0
      %v773 = vadd.f32 0.0, %v772
      %v774 = vpop.f32.mrf.mxu0
      %v775 = vadd.f32 0.0, %v774
      %776 = vmatmul.bf16.gmra.mxu0 %v470
      %v777 = vpop.f32.mrf.mxu0
      %v778 = vadd.f32 0.0, %v777
      %v779 = vpop.f32.mrf.mxu0
      %v780 = vadd.f32 0.0, %v779
      %781 = vmatmul.bf16.gmra.mxu0 %v504
      %v782 = vpop.f32.mrf.mxu0
      %v783 = vadd.f32 0.0, %v782
      %v784 = vpop.f32.mrf.mxu0
      %v785 = vadd.f32 0.0, %v784
      %786 = vmatmul.bf16.gmra.mxu0 %v508
      %v787 = vpop.f32.mrf.mxu0
      %v788 = vadd.f32 0.0, %v787
      %v789 = vpop.f32.mrf.mxu0
      %v790 = vadd.f32 0.0, %v789
      %791 = vdwg.mxu0
      %792 = vmatpush.bf16.msra.mxu0 %v683
      %793 = vmatpush.bf16.msra.mxu0 %v682
      %794 = vmatpush.bf16.msra.mxu0 %v681
      %795 = vmatpush.bf16.msra.mxu0 %v680
      %796 = vmatpush.bf16.msra.mxu0 %v679
      %797 = vmatpush.bf16.msra.mxu0 %v678
      %798 = vmatpush.bf16.msra.mxu0 %v677
      %799 = vmatpush.bf16.msra.mxu0 %v676
      %800 = vmatmul.bf16.gmra.mxu0 %v391
      %v801 = vpop.f32.mrf.mxu0
      %v802 = vadd.f32 %v753, %v801
      %v803 = vpop.f32.mrf.mxu0
      %v804 = vadd.f32 %v755, %v803
      %805 = vmatmul.bf16.gmra.mxu0 %v395
      %v806 = vpop.f32.mrf.mxu0
      %v807 = vadd.f32 %v758, %v806
      %v808 = vpop.f32.mrf.mxu0
      %v809 = vadd.f32 %v760, %v808
      %810 = vmatmul.bf16.gmra.mxu0 %v429
      %v811 = vpop.f32.mrf.mxu0
      %v812 = vadd.f32 %v763, %v811
      %v813 = vpop.f32.mrf.mxu0
      %v814 = vadd.f32 %v765, %v813
      %815 = vmatmul.bf16.gmra.mxu0 %v433
      %v816 = vpop.f32.mrf.mxu0
      %v817 = vadd.f32 %v768, %v816
      %v818 = vpop.f32.mrf.mxu0
      %v819 = vadd.f32 %v770, %v818
      %820 = vmatmul.bf16.gmra.mxu0 %v467
      %v821 = vpop.f32.mrf.mxu0
      %v822 = vadd.f32 %v773, %v821
      %v823 = vpop.f32.mrf.mxu0
      %v824 = vadd.f32 %v775, %v823
      %825 = vmatmul.bf16.gmra.mxu0 %v471
      %v826 = vpop.f32.mrf.mxu0
      %v827 = vadd.f32 %v778, %v826
      %v828 = vpop.f32.mrf.mxu0
      %v829 = vadd.f32 %v780, %v828
      %830 = vmatmul.bf16.gmra.mxu0 %v505
      %v831 = vpop.f32.mrf.mxu0
      %v832 = vadd.f32 %v783, %v831
      %v833 = vpop.f32.mrf.mxu0
      %v834 = vadd.f32 %v785, %v833
      %835 = vmatmul.bf16.gmra.mxu0 %v509
      %v836 = vpop.f32.mrf.mxu0
      %v837 = vadd.f32 %v788, %v836
      %v838 = vpop.f32.mrf.mxu0
      %v839 = vadd.f32 %v790, %v838
      %840 = vdwg.mxu0
      %841 = vmatpush.bf16.msra.mxu0 %v691
      %842 = vmatpush.bf16.msra.mxu0 %v690
      %843 = vmatpush.bf16.msra.mxu0 %v689
      %844 = vmatpush.bf16.msra.mxu0 %v688
      %845 = vmatpush.bf16.msra.mxu0 %v687
      %846 = vmatpush.bf16.msra.mxu0 %v686
      %847 = vmatpush.bf16.msra.mxu0 %v685
      %848 = vmatpush.bf16.msra.mxu0 %v684
      %849 = vmatmul.bf16.gmra.mxu0 %v392
      %v850 = vpop.f32.mrf.mxu0
      %v851 = vadd.f32 %v802, %v850
      %v852 = vpop.f32.mrf.mxu0
      %v853 = vadd.f32 %v804, %v852
      %854 = vmatmul.bf16.gmra.mxu0 %v396
      %v855 = vpop.f32.mrf.mxu0
      %v856 = vadd.f32 %v807, %v855
      %v857 = vpop.f32.mrf.mxu0
      %v858 = vadd.f32 %v809, %v857
      %859 = vmatmul.bf16.gmra.mxu0 %v430
      %v860 = vpop.f32.mrf.mxu0
      %v861 = vadd.f32 %v812, %v860
      %v862 = vpop.f32.mrf.mxu0
      %v863 = vadd.f32 %v814, %v862
      %864 = vmatmul.bf16.gmra.mxu0 %v434
      %v865 = vpop.f32.mrf.mxu0
      %v866 = vadd.f32 %v817, %v865
      %v867 = vpop.f32.mrf.mxu0
      %v868 = vadd.f32 %v819, %v867
      %869 = vmatmul.bf16.gmra.mxu0 %v468
      %v870 = vpop.f32.mrf.mxu0
      %v871 = vadd.f32 %v822, %v870
      %v872 = vpop.f32.mrf.mxu0
      %v873 = vadd.f32 %v824, %v872
      %874 = vmatmul.bf16.gmra.mxu0 %v472
      %v875 = vpop.f32.mrf.mxu0
      %v876 = vadd.f32 %v827, %v875
      %v877 = vpop.f32.mrf.mxu0
      %v878 = vadd.f32 %v829, %v877
      %879 = vmatmul.bf16.gmra.mxu0 %v506
      %v880 = vpop.f32.mrf.mxu0
      %v881 = vadd.f32 %v832, %v880
      %v882 = vpop.f32.mrf.mxu0
      %v883 = vadd.f32 %v834, %v882
      %884 = vmatmul.bf16.gmra.mxu0 %v510
      %v885 = vpop.f32.mrf.mxu0
      %v886 = vadd.f32 %v837, %v885
      %v887 = vpop.f32.mrf.mxu0
      %v888 = vadd.f32 %v839, %v887
      %889 = vdwg.mxu0
      %890 = vmatpush.bf16.msra.mxu0 0
      %891 = vmatpush.bf16.msra.mxu0 0
      %892 = vmatpush.bf16.msra.mxu0 0
      %893 = vmatpush.bf16.msra.mxu0 0
      %894 = vmatpush.bf16.msra.mxu0 0
      %895 = vmatpush.bf16.msra.mxu0 0
      %896 = vmatpush.bf16.msra.mxu0 0
      %897 = vmatpush.bf16.msra.mxu0 %v692
      %898 = vmatmul.bf16.gmra.mxu0 %v720
      %v899 = vpop.f32.mrf.mxu0
      %v900 = vadd.f32 %v851, %v899
      %v901 = vpop.f32.mrf.mxu0
      %v902 = vadd.f32 %v853, %v901
      %903 = vmatmul.bf16.gmra.mxu0 %v723
      %v904 = vpop.f32.mrf.mxu0
      %v905 = vadd.f32 %v856, %v904
      %v906 = vpop.f32.mrf.mxu0
      %v907 = vadd.f32 %v858, %v906
      %908 = vmatmul.bf16.gmra.mxu0 %v726
      %v909 = vpop.f32.mrf.mxu0
      %v910 = vadd.f32 %v861, %v909
      %v911 = vpop.f32.mrf.mxu0
      %v912 = vadd.f32 %v863, %v911
      %913 = vmatmul.bf16.gmra.mxu0 %v729
      %v914 = vpop.f32.mrf.mxu0
      %v915 = vadd.f32 %v866, %v914
      %v916 = vpop.f32.mrf.mxu0
      %v917 = vadd.f32 %v868, %v916
      %918 = vmatmul.bf16.gmra.mxu0 %v732
      %v919 = vpop.f32.mrf.mxu0
      %v920 = vadd.f32 %v871, %v919
      %v921 = vpop.f32.mrf.mxu0
      %v922 = vadd.f32 %v873, %v921
      %923 = vmatmul.bf16.gmra.mxu0 %v735
      %v924 = vpop.f32.mrf.mxu0
      %v925 = vadd.f32 %v876, %v924
      %v926 = vpop.f32.mrf.mxu0
      %v927 = vadd.f32 %v878, %v926
      %928 = vmatmul.bf16.gmra.mxu0 %v738
      %v929 = vpop.f32.mrf.mxu0
      %v930 = vadd.f32 %v881, %v929
      %v931 = vpop.f32.mrf.mxu0
      %v932 = vadd.f32 %v883, %v931
      %933 = vmatmul.bf16.gmra.mxu0 %v741
      %v934 = vpop.f32.mrf.mxu0
      %v935 = vadd.f32 %v886, %v934
      %v936 = vpop.f32.mrf.mxu0
      %v937 = vadd.f32 %v888, %v936
      %938 = vdwg.mxu0
      %vm939 = vcmask 261120
      %v940 = vsel %vm939, %v900, -inf
      %v941 = vsel %vm939, %v910, -inf
      %v942 = vmax.f32 %v940, %v941
      %v943 = vsel %vm939, %v920, -inf
      %v944 = vmax.f32 %v942, %v943
      %v945 = vsel %vm939, %v930, -inf
      %v946 = vmax.f32 %v944, %v945
      %v947 = vsel %vm939, %v902, -inf
      %v948 = vsel %vm939, %v912, -inf
      %v949 = vmax.f32 %v947, %v948
      %v950 = vsel %vm939, %v922, -inf
      %v951 = vmax.f32 %v949, %v950
      %v952 = vsel %vm939, %v932, -inf
      %v953 = vmax.f32 %v951, %v952
      %v954 = vsel %vm939, %v905, -inf
      %v955 = vsel %vm939, %v915, -inf
      %v956 = vmax.f32 %v954, %v955
      %v957 = vsel %vm939, %v925, -inf
      %v958 = vmax.f32 %v956, %v957
      %v959 = vsel %vm939, %v935, -inf
      %v960 = vmax.f32 %v958, %v959
      %v961 = vsel %vm939, %v907, -inf
      %v962 = vsel %vm939, %v917, -inf
      %v963 = vmax.f32 %v961, %v962
      %v964 = vsel %vm939, %v927, -inf
      %v965 = vmax.f32 %v963, %v964
      %v966 = vsel %vm939, %v937, -inf
      %v967 = vmax.f32 %v965, %v966
      %v968 = vld [vmem:[%s5] sm:$0x1]
      %v970 = vperm.slane %v968, 0
      %v972 = vadd.f32 %v946, %v970
      %v973 = vadd.f32 %v953, %v970
      %v974 = vadd.f32 %v960, %v970
      %v975 = vadd.f32 %v967, %v970
      %v976 = vmax.f32 %v972, 0.0
      %v977 = vmax.f32 %v973, 0.0
      %v978 = vmax.f32 %v974, 0.0
      %v979 = vmax.f32 %v975, 0.0
      %v980 = vpack.c.bf16 %v976, %v976
      %v981 = vpack.c.bf16 %v977, %v977
      %v982 = vpack.c.bf16 %v978, %v978
      %v983 = vpack.c.bf16 %v979, %v979
      %vm984 = vcmask 257024
      %985 = vst.msk [vmem:[%s331] sm:$0xf] %vm984, %v980
      %986 = vst.msk [vmem:[%s331 + $0x4] sm:$0xf] %vm984, %v981
      %987 = vst.msk [vmem:[%s331 + $0x8] sm:$0xf] %vm984, %v982
      %988 = vst.msk [vmem:[%s331 + $0xc] sm:$0xf] %vm984, %v983
      %s989 = smul.u32 4, %s17
      %p990 = scmp.lt.s32.totalorder %s989, 7
      %s991 = scalar_select %p990, %s989, 7
      %s992 = smul.addr %s991, 4
      %s993 = scalar_lea.vmem %s6, %s992
      // Predicated region
      $region45: #{lenet_forward.4} parent=43 // pred_check
        %p994 = pneg %p181
      $region46: #{lenet_forward.4} parent=43 // pred_check_branch
        %996 = sbr.rel (%p994) target = $region48
      $region47: #{lenet_forward.4} parent=43 // pred_region
        %s997 = smul.u32 4, %s17
      $region48: #{lenet_forward.4} parent=43 // pred_fallthru
        _
    $region44: #{lenet_forward.4} parent=5 // pred_fallthru
      _
    %p998 = scmp.le.s32.totalorder 2, %s12
    // Predicated region
    $region49: #{lenet_forward.4} parent=5 // pred_check
      %p999 = pneg %p998
    $region50: #{lenet_forward.4} parent=5 // pred_check_branch
      %1001 = sbr.rel (%p999) target = $region52
    $region51: #{lenet_forward.4} parent=5 // pred_region
      %s1002 = ssub.s32 %s12, 2
      // Predicated region
      $region53: #{lenet_forward.4} parent=51 // pred_check
        %p1003 = pneg %p187
      $region54: #{lenet_forward.4} parent=51 // pred_check_branch
        %1005 = sbr.rel (%p1003) target = $region56
      $region55: #{lenet_forward.4} parent=51 // pred_region
        %s1006 = smul.u32 4, %s18
        %p1007 = scmp.lt.s32.totalorder %s1006, 7
        %s1008 = scalar_select %p1007, %s1006, 7
        %s1009 = smul.addr %s1008, 4
        %s1010 = scalar_lea.vmem %s6, %s1009
      $region56: #{lenet_forward.4} parent=51 // pred_fallthru
        _
    $region52: #{lenet_forward.4} parent=5 // pred_fallthru
      _
  $region6: #{lenet_forward.4} parent=0 // loop_footer
    %s16 = sadd.s32 1, %s12
  $region7: #{lenet_forward.4} parent=0 // loop_footer_branch
    %11 = sbr.rel target = $region3
  $region8: #{lenet_forward.4} parent=0 // loop_exit
    _

// kernel: lenet_forward.5
$region0: #{lenet_forward.5}
  #allocation0 [shape = 'u32[]', space=smem, size = 0x4, offset = 0x4, fixed_abs, tag = 'smem constant byte address 0x4 - core index']
  #allocation1 [shape = 'u32[72,128]{1,0:T(1,128)}', space=vmem, size = 0x9000, scoped, tag = 'internal scratch']
  %s0 = inlined_call_operand.vmem [shape: bf16[16,800], index: 0, kind: input, shape index: {}]
  %s1 = inlined_call_operand.vmem [shape: bf16[800,120], index: 1, kind: input, shape index: {}]
  %s2 = inlined_call_operand.vmem [shape: f32[1,120], index: 2, kind: input, shape index: {}]
  %s3 = inlined_call_operand.vmem [shape: bf16[120,84], index: 3, kind: input, shape index: {}]
  %s4 = inlined_call_operand.vmem [shape: f32[1,84], index: 4, kind: input, shape index: {}]
  %s5 = inlined_call_operand.vmem [shape: bf16[84,10], index: 5, kind: input, shape index: {}]
  %s6 = inlined_call_operand.vmem [shape: f32[1,10], index: 6, kind: input, shape index: {}]
  %s7 = inlined_call_operand.vmem [shape: f32[16,10], index: 7, kind: output, shape index: {}]
  %s8 = sld [smem:[#allocation0]]
  $region38: #{lenet_forward.5} parent=0
    _
  %s10 = ssub.s32 1, %s8
  %s11 = scalar_select 0, %s10, %s8
  // Predicated region
  $region2: #{lenet_forward.5} parent=0 // pred_check
    _
  $region3: #{lenet_forward.5} parent=0 // pred_check_branch
    %13 = sbr.rel (0) target = $region5
  $region4: #{lenet_forward.5} parent=0 // pred_region
    _
  $region5: #{lenet_forward.5} parent=0 // pred_fallthru
    _
  // Predicated region
  $region6: #{lenet_forward.5} parent=0 // pred_check
    _
  $region7: #{lenet_forward.5} parent=0 // pred_check_branch
    %15 = sbr.rel (0) target = $region9
  $region8: #{lenet_forward.5} parent=0 // pred_region
    _
  $region9: #{lenet_forward.5} parent=0 // pred_fallthru
    _
  // Predicated region
  $region10: #{lenet_forward.5} parent=0 // pred_check
    _
  $region11: #{lenet_forward.5} parent=0 // pred_check_branch
    %17 = sbr.rel (0) target = $region13
  $region12: #{lenet_forward.5} parent=0 // pred_region
    _
  $region13: #{lenet_forward.5} parent=0 // pred_fallthru
    _
  // Predicated region
  $region14: #{lenet_forward.5} parent=0 // pred_check
    _
  $region15: #{lenet_forward.5} parent=0 // pred_check_branch
    %19 = sbr.rel (0) target = $region17
  $region16: #{lenet_forward.5} parent=0 // pred_region
    _
  $region17: #{lenet_forward.5} parent=0 // pred_fallthru
    _
  // Predicated region
  $region18: #{lenet_forward.5} parent=0 // pred_check
    _
  $region19: #{lenet_forward.5} parent=0 // pred_check_branch
    %21 = sbr.rel (0) target = $region21
  $region20: #{lenet_forward.5} parent=0 // pred_region
    _
  $region21: #{lenet_forward.5} parent=0 // pred_fallthru
    _
  // Predicated region
  $region22: #{lenet_forward.5} parent=0 // pred_check
    _
  $region23: #{lenet_forward.5} parent=0 // pred_check_branch
    %23 = sbr.rel (0) target = $region25
  $region24: #{lenet_forward.5} parent=0 // pred_region
    _
  $region25: #{lenet_forward.5} parent=0 // pred_fallthru
    _
  // Predicated region
  $region26: #{lenet_forward.5} parent=0 // pred_check
    _
  $region27: #{lenet_forward.5} parent=0 // pred_check_branch
    %25 = sbr.rel (0) target = $region29
  $region28: #{lenet_forward.5} parent=0 // pred_region
    _
  $region29: #{lenet_forward.5} parent=0 // pred_fallthru
    _
  %v27 = vld [vmem:[%s0] sm:$0xff]
  %v28 = vld [vmem:[%s0 + $0x8] sm:$0xff]
  %v29 = vld [vmem:[%s0 + $0x10] sm:$0xff]
  %v30 = vld [vmem:[%s0 + $0x18] sm:$0xf]
  %v31 = vld [vmem:[%s0 + $0x1c] sm:$0xff]
  %v32 = vld [vmem:[%s0 + $0x24] sm:$0xff]
  %v33 = vld [vmem:[%s0 + $0x2c] sm:$0xff]
  %v34 = vld [vmem:[%s0 + $0x34] sm:$0xf]
  %v35 = vld [vmem:[%s1] sm:$0xf]
  %v36 = vld [vmem:[%s1 + $0x4] sm:$0xf]
  %v37 = vld [vmem:[%s1 + $0x8] sm:$0xf]
  %v38 = vld [vmem:[%s1 + $0xc] sm:$0xf]
  %v39 = vld [vmem:[%s1 + $0x10] sm:$0xf]
  %v40 = vld [vmem:[%s1 + $0x14] sm:$0xf]
  %v41 = vld [vmem:[%s1 + $0x18] sm:$0xf]
  %v42 = vld [vmem:[%s1 + $0x1c] sm:$0xf]
  %v43 = vld [vmem:[%s1 + $0x20] sm:$0xf]
  %v44 = vld [vmem:[%s1 + $0x24] sm:$0xf]
  %v45 = vld [vmem:[%s1 + $0x28] sm:$0xf]
  %v46 = vld [vmem:[%s1 + $0x2c] sm:$0xf]
  %v47 = vld [vmem:[%s1 + $0x30] sm:$0xf]
  %v48 = vld [vmem:[%s1 + $0x34] sm:$0xf]
  %v49 = vld [vmem:[%s1 + $0x38] sm:$0xf]
  %v50 = vld [vmem:[%s1 + $0x3c] sm:$0xf]
  %v51 = vld [vmem:[%s1 + $0x40] sm:$0xf]
  %v52 = vld [vmem:[%s1 + $0x44] sm:$0xf]
  %v53 = vld [vmem:[%s1 + $0x48] sm:$0xf]
  %v54 = vld [vmem:[%s1 + $0x4c] sm:$0xf]
  %v55 = vld [vmem:[%s1 + $0x50] sm:$0xf]
  %v56 = vld [vmem:[%s1 + $0x54] sm:$0xf]
  %v57 = vld [vmem:[%s1 + $0x58] sm:$0xf]
  %v58 = vld [vmem:[%s1 + $0x5c] sm:$0xf]
  %v59 = vld [vmem:[%s1 + $0x60] sm:$0xf]
  %v60 = vld [vmem:[%s1 + $0x64] sm:$0xf]
  %v61 = vld [vmem:[%s1 + $0x68] sm:$0xf]
  %v62 = vld [vmem:[%s1 + $0x6c] sm:$0xf]
  %v63 = vld [vmem:[%s1 + $0x70] sm:$0xf]
  %v64 = vld [vmem:[%s1 + $0x74] sm:$0xf]
  %v65 = vld [vmem:[%s1 + $0x78] sm:$0xf]
  %v66 = vld [vmem:[%s1 + $0x7c] sm:$0xf]
  %v67 = vld [vmem:[%s1 + $0x80] sm:$0xf]
  %v68 = vld [vmem:[%s1 + $0x84] sm:$0xf]
  %v69 = vld [vmem:[%s1 + $0x88] sm:$0xf]
  %v70 = vld [vmem:[%s1 + $0x8c] sm:$0xf]
  %v71 = vld [vmem:[%s1 + $0x90] sm:$0xf]
  %v72 = vld [vmem:[%s1 + $0x94] sm:$0xf]
  %v73 = vld [vmem:[%s1 + $0x98] sm:$0xf]
  %v74 = vld [vmem:[%s1 + $0x9c] sm:$0xf]
  %v75 = vld [vmem:[%s1 + $0xa0] sm:$0xf]
  %v76 = vld [vmem:[%s1 + $0xa4] sm:$0xf]
  %v77 = vld [vmem:[%s1 + $0xa8] sm:$0xf]
  %v78 = vld [vmem:[%s1 + $0xac] sm:$0xf]
  %v79 = vld [vmem:[%s1 + $0xb0] sm:$0xf]
  %v80 = vld [vmem:[%s1 + $0xb4] sm:$0xf]
  %v81 = vld [vmem:[%s1 + $0xb8] sm:$0xf]
  %v82 = vld [vmem:[%s1 + $0xbc] sm:$0xf]
  %v83 = vld [vmem:[%s1 + $0xc0] sm:$0xf]
  %v84 = vld [vmem:[%s1 + $0xc4] sm:$0xf]
  %v85 = vld [vmem:[%s1 + $0xc8] sm:$0xf]
  %v86 = vld [vmem:[%s1 + $0xcc] sm:$0xf]
  %v87 = vld [vmem:[%s1 + $0xd0] sm:$0xf]
  %v88 = vld [vmem:[%s1 + $0xd4] sm:$0xf]
  %v89 = vld [vmem:[%s1 + $0xd8] sm:$0xf]
  %v90 = vld [vmem:[%s1 + $0xdc] sm:$0xf]
  %v91 = vld [vmem:[%s1 + $0xe0] sm:$0xf]
  %v92 = vld [vmem:[%s1 + $0xe4] sm:$0xf]
  %v93 = vld [vmem:[%s1 + $0xe8] sm:$0xf]
  %v94 = vld [vmem:[%s1 + $0xec] sm:$0xf]
  %v95 = vld [vmem:[%s1 + $0xf0] sm:$0xf]
  %v96 = vld [vmem:[%s1 + $0xf4] sm:$0xf]
  %v97 = vld [vmem:[%s1 + $0xf8] sm:$0xf]
  %v98 = vld [vmem:[%s1 + $0xfc] sm:$0xf]
  %v99 = vld [vmem:[%s1 + $0x100] sm:$0xf]
  %v100 = vld [vmem:[%s1 + $0x104] sm:$0xf]
  %v101 = vld [vmem:[%s1 + $0x108] sm:$0xf]
  %v102 = vld [vmem:[%s1 + $0x10c] sm:$0xf]
  %v103 = vld [vmem:[%s1 + $0x110] sm:$0xf]
  %v104 = vld [vmem:[%s1 + $0x114] sm:$0xf]
  %v105 = vld [vmem:[%s1 + $0x118] sm:$0xf]
  %v106 = vld [vmem:[%s1 + $0x11c] sm:$0xf]
  %v107 = vld [vmem:[%s1 + $0x120] sm:$0xf]
  %v108 = vld [vmem:[%s1 + $0x124] sm:$0xf]
  %v109 = vld [vmem:[%s1 + $0x128] sm:$0xf]
  %v110 = vld [vmem:[%s1 + $0x12c] sm:$0xf]
  %v111 = vld [vmem:[%s1 + $0x130] sm:$0xf]
  %v112 = vld [vmem:[%s1 + $0x134] sm:$0xf]
  %v113 = vld [vmem:[%s1 + $0x138] sm:$0xf]
  %v114 = vld [vmem:[%s1 + $0x13c] sm:$0xf]
  %v115 = vld [vmem:[%s1 + $0x140] sm:$0xf]
  %v116 = vld [vmem:[%s1 + $0x144] sm:$0xf]
  %v117 = vld [vmem:[%s1 + $0x148] sm:$0xf]
  %v118 = vld [vmem:[%s1 + $0x14c] sm:$0xf]
  %v119 = vld [vmem:[%s1 + $0x150] sm:$0xf]
  %v120 = vld [vmem:[%s1 + $0x154] sm:$0xf]
  %v121 = vld [vmem:[%s1 + $0x158] sm:$0xf]
  %v122 = vld [vmem:[%s1 + $0x15c] sm:$0xf]
  %v123 = vld [vmem:[%s1 + $0x160] sm:$0xf]
  %v124 = vld [vmem:[%s1 + $0x164] sm:$0xf]
  %v125 = vld [vmem:[%s1 + $0x168] sm:$0xf]
  %v126 = vld [vmem:[%s1 + $0x16c] sm:$0xf]
  %v127 = vld [vmem:[%s1 + $0x170] sm:$0xf]
  %v128 = vld [vmem:[%s1 + $0x174] sm:$0xf]
  %v129 = vld [vmem:[%s1 + $0x178] sm:$0xf]
  %v130 = vld [vmem:[%s1 + $0x17c] sm:$0xf]
  %v131 = vld [vmem:[%s1 + $0x180] sm:$0xf]
  %v132 = vld [vmem:[%s1 + $0x184] sm:$0xf]
  %v133 = vld [vmem:[%s1 + $0x188] sm:$0xf]
  %v134 = vld [vmem:[%s1 + $0x18c] sm:$0xf]
  %v135 = vld [vmem:[%s2] sm:$0x1]
  %v137 = vperm.slane %v135, 0
  %v147 = vunpack.c.l.b16 %v27
  %v148 = vunpack.c.h.b16 %v27
  %v149 = vunpack.c.l.b16 %v28
  %v150 = vunpack.c.h.b16 %v28
  %v151 = vunpack.c.l.b16 %v29
  %v152 = vunpack.c.h.b16 %v29
  %v153 = vunpack.c.l.b16 %v30
  %v154 = vunpack.c.l.b16 %v31
  %v155 = vunpack.c.h.b16 %v31
  %v156 = vunpack.c.l.b16 %v32
  %v157 = vunpack.c.h.b16 %v32
  %v158 = vunpack.c.l.b16 %v33
  %v159 = vunpack.c.h.b16 %v33
  %v160 = vunpack.c.l.b16 %v34
  %v161 = vpack.c.b16 %v154, %v147
  %v162 = vpack.c.b16 %v155, %v148
  %v163 = vpack.c.b16 %v156, %v149
  %v164 = vpack.c.b16 %v157, %v150
  %v165 = vpack.c.b16 %v158, %v151
  %v166 = vpack.c.b16 %v159, %v152
  %v167 = vpack.c.b16 %v160, %v153
  %v274 = vunpack.c.l.b16 %v35
  %v275 = vunpack.c.l.b16 %v36
  %v276 = vunpack.c.l.b16 %v37
  %v277 = vunpack.c.l.b16 %v38
  %v278 = vunpack.c.l.b16 %v39
  %v279 = vunpack.c.l.b16 %v40
  %v280 = vunpack.c.l.b16 %v41
  %v281 = vunpack.c.l.b16 %v42
  %v282 = vunpack.c.l.b16 %v43
  %v283 = vunpack.c.l.b16 %v44
  %v284 = vunpack.c.l.b16 %v45
  %v285 = vunpack.c.l.b16 %v46
  %v286 = vunpack.c.l.b16 %v47
  %v287 = vunpack.c.l.b16 %v48
  %v288 = vunpack.c.l.b16 %v49
  %v289 = vunpack.c.l.b16 %v50
  %v290 = vunpack.c.l.b16 %v51
  %v291 = vunpack.c.l.b16 %v52
  %v292 = vunpack.c.l.b16 %v53
  %v293 = vunpack.c.l.b16 %v54
  %v294 = vunpack.c.l.b16 %v55
  %v295 = vunpack.c.l.b16 %v56
  %v296 = vunpack.c.l.b16 %v57
  %v297 = vunpack.c.l.b16 %v58
  %v298 = vunpack.c.l.b16 %v59
  %v299 = vunpack.c.l.b16 %v60
  %v300 = vunpack.c.l.b16 %v61
  %v301 = vunpack.c.l.b16 %v62
  %v302 = vunpack.c.l.b16 %v63
  %v303 = vunpack.c.l.b16 %v64
  %v304 = vunpack.c.l.b16 %v65
  %v305 = vunpack.c.l.b16 %v66
  %v306 = vunpack.c.l.b16 %v67
  %v307 = vunpack.c.l.b16 %v68
  %v308 = vunpack.c.l.b16 %v69
  %v309 = vunpack.c.l.b16 %v70
  %v310 = vunpack.c.l.b16 %v71
  %v311 = vunpack.c.l.b16 %v72
  %v312 = vunpack.c.l.b16 %v73
  %v313 = vunpack.c.l.b16 %v74
  %v314 = vunpack.c.l.b16 %v75
  %v315 = vunpack.c.l.b16 %v76
  %v316 = vunpack.c.l.b16 %v77
  %v317 = vunpack.c.l.b16 %v78
  %v318 = vunpack.c.l.b16 %v79
  %v319 = vunpack.c.l.b16 %v80
  %v320 = vunpack.c.l.b16 %v81
  %v321 = vunpack.c.l.b16 %v82
  %v322 = vunpack.c.l.b16 %v83
  %v323 = vunpack.c.l.b16 %v84
  %v324 = vunpack.c.l.b16 %v85
  %v325 = vunpack.c.l.b16 %v86
  %v326 = vunpack.c.l.b16 %v87
  %v327 = vunpack.c.l.b16 %v88
  %v328 = vunpack.c.l.b16 %v89
  %v329 = vunpack.c.l.b16 %v90
  %v330 = vunpack.c.l.b16 %v91
  %v331 = vunpack.c.l.b16 %v92
  %v332 = vunpack.c.l.b16 %v93
  %v333 = vunpack.c.l.b16 %v94
  %v334 = vunpack.c.l.b16 %v95
  %v335 = vunpack.c.l.b16 %v96
  %v336 = vunpack.c.l.b16 %v97
  %v337 = vunpack.c.l.b16 %v98
  %v338 = vunpack.c.l.b16 %v99
  %v339 = vunpack.c.l.b16 %v100
  %v340 = vunpack.c.l.b16 %v101
  %v341 = vunpack.c.l.b16 %v102
  %v342 = vunpack.c.l.b16 %v103
  %v343 = vunpack.c.l.b16 %v104
  %v344 = vunpack.c.l.b16 %v105
  %v345 = vunpack.c.l.b16 %v106
  %v346 = vunpack.c.l.b16 %v107
  %v347 = vunpack.c.l.b16 %v108
  %v348 = vunpack.c.l.b16 %v109
  %v349 = vunpack.c.l.b16 %v110
  %v350 = vunpack.c.l.b16 %v111
  %v351 = vunpack.c.l.b16 %v112
  %v352 = vunpack.c.l.b16 %v113
  %v353 = vunpack.c.l.b16 %v114
  %v354 = vunpack.c.l.b16 %v115
  %v355 = vunpack.c.l.b16 %v116
  %v356 = vunpack.c.l.b16 %v117
  %v357 = vunpack.c.l.b16 %v118
  %v358 = vunpack.c.l.b16 %v119
  %v359 = vunpack.c.l.b16 %v120
  %v360 = vunpack.c.l.b16 %v121
  %v361 = vunpack.c.l.b16 %v122
  %v362 = vunpack.c.l.b16 %v123
  %v363 = vunpack.c.l.b16 %v124
  %v364 = vunpack.c.l.b16 %v125
  %v365 = vunpack.c.l.b16 %v126
  %v366 = vunpack.c.l.b16 %v127
  %v367 = vunpack.c.l.b16 %v128
  %v368 = vunpack.c.l.b16 %v129
  %v369 = vunpack.c.l.b16 %v130
  %v370 = vunpack.c.l.b16 %v131
  %v371 = vunpack.c.l.b16 %v132
  %v372 = vunpack.c.l.b16 %v133
  %v373 = vunpack.c.l.b16 %v134
  %v374 = vpack.c.b16 %v275, %v274
  %v375 = vpack.c.b16 %v277, %v276
  %v376 = vpack.c.b16 %v279, %v278
  %v377 = vpack.c.b16 %v281, %v280
  %v378 = vpack.c.b16 %v283, %v282
  %v379 = vpack.c.b16 %v285, %v284
  %v380 = vpack.c.b16 %v287, %v286
  %v381 = vpack.c.b16 %v289, %v288
  %v382 = vpack.c.b16 %v291, %v290
  %v383 = vpack.c.b16 %v293, %v292
  %v384 = vpack.c.b16 %v295, %v294
  %v385 = vpack.c.b16 %v297, %v296
  %v386 = vpack.c.b16 %v299, %v298
  %v387 = vpack.c.b16 %v301, %v300
  %v388 = vpack.c.b16 %v303, %v302
  %v389 = vpack.c.b16 %v305, %v304
  %v390 = vpack.c.b16 %v307, %v306
  %v391 = vpack.c.b16 %v309, %v308
  %v392 = vpack.c.b16 %v311, %v310
  %v393 = vpack.c.b16 %v313, %v312
  %v394 = vpack.c.b16 %v315, %v314
  %v395 = vpack.c.b16 %v317, %v316
  %v396 = vpack.c.b16 %v319, %v318
  %v397 = vpack.c.b16 %v321, %v320
  %v398 = vpack.c.b16 %v323, %v322
  %v399 = vpack.c.b16 %v325, %v324
  %v400 = vpack.c.b16 %v327, %v326
  %v401 = vpack.c.b16 %v329, %v328
  %v402 = vpack.c.b16 %v331, %v330
  %v403 = vpack.c.b16 %v333, %v332
  %v404 = vpack.c.b16 %v335, %v334
  %v405 = vpack.c.b16 %v337, %v336
  %v406 = vpack.c.b16 %v339, %v338
  %v407 = vpack.c.b16 %v341, %v340
  %v408 = vpack.c.b16 %v343, %v342
  %v409 = vpack.c.b16 %v345, %v344
  %v410 = vpack.c.b16 %v347, %v346
  %v411 = vpack.c.b16 %v349, %v348
  %v412 = vpack.c.b16 %v351, %v350
  %v413 = vpack.c.b16 %v353, %v352
  %v414 = vpack.c.b16 %v355, %v354
  %v415 = vpack.c.b16 %v357, %v356
  %v416 = vpack.c.b16 %v359, %v358
  %v417 = vpack.c.b16 %v361, %v360
  %v418 = vpack.c.b16 %v363, %v362
  %v419 = vpack.c.b16 %v365, %v364
  %v420 = vpack.c.b16 %v367, %v366
  %v421 = vpack.c.b16 %v369, %v368
  %v422 = vpack.c.b16 %v371, %v370
  %v423 = vpack.c.b16 %v373, %v372
  %vm474 = vcmask 261120
  %v476 = vsel %vm474, %v167, 0
  %478 = vmatpush.bf16.msra.mxu0 %v381
  %479 = vmatpush.bf16.msra.mxu0 %v380
  %480 = vmatpush.bf16.msra.mxu0 %v379
  %481 = vmatpush.bf16.msra.mxu0 %v378
  %482 = vmatpush.bf16.msra.mxu0 %v377
  %483 = vmatpush.bf16.msra.mxu0 %v376
  %484 = vmatpush.bf16.msra.mxu0 %v375
  %485 = vmatpush.bf16.msra.mxu0 %v374
  %486 = vmatmul.bf16.gmra.mxu0 %v161
  %v487 = vpop.f32.mrf.mxu0
  %v488 = vadd.f32 %v137, %v487
  %v489 = vpop.f32.mrf.mxu0
  %v490 = vadd.f32 %v137, %v489
  %491 = vdwg.mxu0
  %492 = vmatpush.bf16.msra.mxu0 %v389
  %493 = vmatpush.bf16.msra.mxu0 %v388
  %494 = vmatpush.bf16.msra.mxu0 %v387
  %495 = vmatpush.bf16.msra.mxu0 %v386
  %496 = vmatpush.bf16.msra.mxu0 %v385
  %497 = vmatpush.bf16.msra.mxu0 %v384
  %498 = vmatpush.bf16.msra.mxu0 %v383
  %499 = vmatpush.bf16.msra.mxu0 %v382
  %500 = vmatmul.bf16.gmra.mxu0 %v162
  %v501 = vpop.f32.mrf.mxu0
  %v502 = vadd.f32 %v488, %v501
  %v503 = vpop.f32.mrf.mxu0
  %v504 = vadd.f32 %v490, %v503
  %505 = vdwg.mxu0
  %506 = vmatpush.bf16.msra.mxu0 %v397
  %507 = vmatpush.bf16.msra.mxu0 %v396
  %508 = vmatpush.bf16.msra.mxu0 %v395
  %509 = vmatpush.bf16.msra.mxu0 %v394
  %510 = vmatpush.bf16.msra.mxu0 %v393
  %511 = vmatpush.bf16.msra.mxu0 %v392
  %512 = vmatpush.bf16.msra.mxu0 %v391
  %513 = vmatpush.bf16.msra.mxu0 %v390
  %514 = vmatmul.bf16.gmra.mxu0 %v163
  %v515 = vpop.f32.mrf.mxu0
  %v516 = vadd.f32 %v502, %v515
  %v517 = vpop.f32.mrf.mxu0
  %v518 = vadd.f32 %v504, %v517
  %519 = vdwg.mxu0
  %520 = vmatpush.bf16.msra.mxu0 %v405
  %521 = vmatpush.bf16.msra.mxu0 %v404
  %522 = vmatpush.bf16.msra.mxu0 %v403
  %523 = vmatpush.bf16.msra.mxu0 %v402
  %524 = vmatpush.bf16.msra.mxu0 %v401
  %525 = vmatpush.bf16.msra.mxu0 %v400
  %526 = vmatpush.bf16.msra.mxu0 %v399
  %527 = vmatpush.bf16.msra.mxu0 %v398
  %528 = vmatmul.bf16.gmra.mxu0 %v164
  %v529 = vpop.f32.mrf.mxu0
  %v530 = vadd.f32 %v516, %v529
  %v531 = vpop.f32.mrf.mxu0
  %v532 = vadd.f32 %v518, %v531
  %533 = vdwg.mxu0
  %534 = vmatpush.bf16.msra.mxu0 %v413
  %535 = vmatpush.bf16.msra.mxu0 %v412
  %536 = vmatpush.bf16.msra.mxu0 %v411
  %537 = vmatpush.bf16.msra.mxu0 %v410
  %538 = vmatpush.bf16.msra.mxu0 %v409
  %539 = vmatpush.bf16.msra.mxu0 %v408
  %540 = vmatpush.bf16.msra.mxu0 %v407
  %541 = vmatpush.bf16.msra.mxu0 %v406
  %542 = vmatmul.bf16.gmra.mxu0 %v165
  %v543 = vpop.f32.mrf.mxu0
  %v544 = vadd.f32 %v530, %v543
  %v545 = vpop.f32.mrf.mxu0
  %v546 = vadd.f32 %v532, %v545
  %547 = vdwg.mxu0
  %548 = vmatpush.bf16.msra.mxu0 %v421
  %549 = vmatpush.bf16.msra.mxu0 %v420
  %550 = vmatpush.bf16.msra.mxu0 %v419
  %551 = vmatpush.bf16.msra.mxu0 %v418
  %552 = vmatpush.bf16.msra.mxu0 %v417
  %553 = vmatpush.bf16.msra.mxu0 %v416
  %554 = vmatpush.bf16.msra.mxu0 %v415
  %555 = vmatpush.bf16.msra.mxu0 %v414
  %556 = vmatmul.bf16.gmra.mxu0 %v166
  %v557 = vpop.f32.mrf.mxu0
  %v558 = vadd.f32 %v544, %v557
  %v559 = vpop.f32.mrf.mxu0
  %v560 = vadd.f32 %v546, %v559
  %561 = vdwg.mxu0
  %562 = vmatpush.bf16.msra.mxu0 0
  %563 = vmatpush.bf16.msra.mxu0 0
  %564 = vmatpush.bf16.msra.mxu0 0
  %565 = vmatpush.bf16.msra.mxu0 0
  %566 = vmatpush.bf16.msra.mxu0 0
  %567 = vmatpush.bf16.msra.mxu0 0
  %568 = vmatpush.bf16.msra.mxu0 %v423
  %569 = vmatpush.bf16.msra.mxu0 %v422
  %570 = vmatmul.bf16.gmra.mxu0 %v476
  %v571 = vpop.f32.mrf.mxu0
  %v572 = vadd.f32 %v558, %v571
  %v573 = vpop.f32.mrf.mxu0
  %v574 = vadd.f32 %v560, %v573
  %575 = vdwg.mxu0
  %v576 = vpack.c.bf16 %v574, %v572
  %v577 = vld [vmem:[%s3] sm:$0xf]
  %v578 = vld [vmem:[%s3 + $0x4] sm:$0xf]
  %v579 = vld [vmem:[%s3 + $0x8] sm:$0xf]
  %v580 = vld [vmem:[%s3 + $0xc] sm:$0xf]
  %v581 = vld [vmem:[%s3 + $0x10] sm:$0xf]
  %v582 = vld [vmem:[%s3 + $0x14] sm:$0xf]
  %v583 = vld [vmem:[%s3 + $0x18] sm:$0xf]
  %v584 = vld [vmem:[%s3 + $0x1c] sm:$0xf]
  %v585 = vld [vmem:[%s3 + $0x20] sm:$0xf]
  %v586 = vld [vmem:[%s3 + $0x24] sm:$0xf]
  %v587 = vld [vmem:[%s3 + $0x28] sm:$0xf]
  %v588 = vld [vmem:[%s3 + $0x2c] sm:$0xf]
  %v589 = vld [vmem:[%s3 + $0x30] sm:$0xf]
  %v590 = vld [vmem:[%s3 + $0x34] sm:$0xf]
  %v591 = vld [vmem:[%s3 + $0x38] sm:$0xf]
  %v592 = vld [vmem:[%s4] sm:$0x1]
  %v594 = vperm.slane %v592, 0
  %v611 = vunpack.c.l.b16 %v577
  %v612 = vunpack.c.l.b16 %v578
  %v613 = vunpack.c.l.b16 %v579
  %v614 = vunpack.c.l.b16 %v580
  %v615 = vunpack.c.l.b16 %v581
  %v616 = vunpack.c.l.b16 %v582
  %v617 = vunpack.c.l.b16 %v583
  %v618 = vunpack.c.l.b16 %v584
  %v619 = vunpack.c.l.b16 %v585
  %v620 = vunpack.c.l.b16 %v586
  %v621 = vunpack.c.l.b16 %v587
  %v622 = vunpack.c.l.b16 %v588
  %v623 = vunpack.c.l.b16 %v589
  %v624 = vunpack.c.l.b16 %v590
  %v625 = vunpack.c.l.b16 %v591
  %v626 = vpack.c.b16 %v612, %v611
  %v627 = vpack.c.b16 %v614, %v613
  %v628 = vpack.c.b16 %v616, %v615
  %v629 = vpack.c.b16 %v618, %v617
  %v630 = vpack.c.b16 %v620, %v619
  %v631 = vpack.c.b16 %v622, %v621
  %v632 = vpack.c.b16 %v624, %v623
  %v633 = vpack.c.b16 %v625, %v625
  %vm641 = vcmask 982016
  %v643 = vsel %vm641, %v576, 0
  %vm645 = vcmask 1043456
  %v647 = vsel %vm645, %v633, 0
  %649 = vmatpush.bf16.msra.mxu0 %v647
  %650 = vmatpush.bf16.msra.mxu0 %v632
  %651 = vmatpush.bf16.msra.mxu0 %v631
  %652 = vmatpush.bf16.msra.mxu0 %v630
  %653 = vmatpush.bf16.msra.mxu0 %v629
  %654 = vmatpush.bf16.msra.mxu0 %v628
  %655 = vmatpush.bf16.msra.mxu0 %v627
  %656 = vmatpush.bf16.msra.mxu0 %v626
  %657 = vmatmul.bf16.gmra.mxu0 %v643
  %v658 = vpop.f32.mrf.mxu0
  %v659 = vadd.f32 %v594, %v658
  %v660 = vpop.f32.mrf.mxu0
  %v661 = vadd.f32 %v594, %v660
  %662 = vdwg.mxu0
  %v663 = vpack.c.bf16 %v661, %v659
  %v664 = vld [vmem:[%s5] sm:$0xf]
  %v665 = vld [vmem:[%s5 + $0x4] sm:$0xf]
  %v666 = vld [vmem:[%s5 + $0x8] sm:$0xf]
  %v667 = vld [vmem:[%s5 + $0xc] sm:$0xf]
  %v668 = vld [vmem:[%s5 + $0x10] sm:$0xf]
  %v669 = vld [vmem:[%s5 + $0x14] sm:$0xf]
  %v670 = vld [vmem:[%s5 + $0x18] sm:$0xf]
  %v671 = vld [vmem:[%s5 + $0x1c] sm:$0xf]
  %v672 = vld [vmem:[%s5 + $0x20] sm:$0xf]
  %v673 = vld [vmem:[%s5 + $0x24] sm:$0xf]
  %v674 = vld [vmem:[%s5 + $0x28] sm:$0x3]
  %v675 = vld [vmem:[%s6] sm:$0x1]
  %v677 = vperm.slane %v675, 0
  %v690 = vunpack.c.l.b16 %v664
  %v691 = vunpack.c.l.b16 %v665
  %v692 = vunpack.c.l.b16 %v666
  %v693 = vunpack.c.l.b16 %v667
  %v694 = vunpack.c.l.b16 %v668
  %v695 = vunpack.c.l.b16 %v669
  %v696 = vunpack.c.l.b16 %v670
  %v697 = vunpack.c.l.b16 %v671
  %v698 = vunpack.c.l.b16 %v672
  %v699 = vunpack.c.l.b16 %v673
  %v700 = vunpack.c.l.b16 %v674
  %v701 = vpack.c.b16 %v691, %v690
  %v702 = vpack.c.b16 %v693, %v692
  %v703 = vpack.c.b16 %v695, %v694
  %v704 = vpack.c.b16 %v697, %v696
  %v705 = vpack.c.b16 %v699, %v698
  %v706 = vpack.c.b16 %v700, %v700
  %vm712 = vcmask 687104
  %v714 = vsel %vm712, %v663, 0
  %vm716 = vcmask 1041408
  %v718 = vsel %vm716, %v706, 0
  %720 = vmatpush.bf16.msra.mxu0 0
  %721 = vmatpush.bf16.msra.mxu0 0
  %722 = vmatpush.bf16.msra.mxu0 %v718
  %723 = vmatpush.bf16.msra.mxu0 %v705
  %724 = vmatpush.bf16.msra.mxu0 %v704
  %725 = vmatpush.bf16.msra.mxu0 %v703
  %726 = vmatpush.bf16.msra.mxu0 %v702
  %727 = vmatpush.bf16.msra.mxu0 %v701
  %728 = vmatmul.bf16.gmra.mxu0 %v714
  %v729 = vpop.f32.mrf.mxu0
  %v730 = vadd.f32 %v677, %v729
  %v731 = vpop.f32.mrf.mxu0
  %v732 = vadd.f32 %v677, %v731
  %733 = vdwg.mxu0
  %vm734 = vcmask 80896
  %735 = vst.msk [vmem:[%s7] sm:$0xff] %vm734, %v730
  %736 = vst.msk [vmem:[%s7 + $0x8] sm:$0xff] %vm734, %v732
  // Predicated region
  $region30: #{lenet_forward.5} parent=0 // pred_check
    _
  $region31: #{lenet_forward.5} parent=0 // pred_check_branch
    %738 = sbr.rel (0) target = $region33
  $region32: #{lenet_forward.5} parent=0 // pred_region
    _
  $region33: #{lenet_forward.5} parent=0 // pred_fallthru
    _
  // Predicated region
  $region34: #{lenet_forward.5} parent=0 // pred_check
    _
  $region35: #{lenet_forward.5} parent=0 // pred_check_branch
    %740 = sbr.rel (0) target = $region37
  $region36: #{lenet_forward.5} parent=0 // pred_region
    _
  $region37: #{lenet_forward.5} parent=0 // pred_fallthru
    _

</llo_original>
